<compile_context>
chip_gen: v7x
topology: tpu7x:2x2x1
jax: 0.10.0
libtpu: 0.0.40
codegen_flags: <defaults>
</compile_context>

<pallas_src>
import functools

import jax
import jax.numpy as jnp
from jax.experimental import pallas as pl
from jax.experimental.pallas import tpu as pltpu

D0, D1, D2, D3 = 784, 500, 30, 10          # logical feature sizes
P1, P2, P3 = 512, 128, 128                 # lane-padded feature sizes (K=784 unpadded)
DROPOUT_P = 0.4
TILE_B = 1024                              # batch rows per grid step (large batches)


def _round_up(n, m):
    return (n + m - 1) // m * m


# --------------------------------------------------------------------------
# Kernels
# --------------------------------------------------------------------------
def _mlp_compute(x, w1_ref, b1_ref, w2_ref, b2_ref, w3_ref, b3_ref, mask=None):
    wdt = w1_ref.dtype
    h1 = jnp.maximum(
        jnp.dot(x.astype(wdt), w1_ref[...],
                preferred_element_type=jnp.float32) + b1_ref[...], 0.0)
    h2 = jnp.maximum(
        jnp.dot(h1.astype(wdt), w2_ref[...],
                preferred_element_type=jnp.float32) + b2_ref[...], 0.0)
    if mask is not None:                    # inverted dropout (training only)
        h2 = h2 * mask
    h3 = jnp.maximum(
        jnp.dot(h2.astype(wdt), w3_ref[...],
                preferred_element_type=jnp.float32) + b3_ref[...], 0.0)
    return h3


def _mlp_kernel_eval(x_ref, w1_ref, b1_ref, w2_ref, b2_ref, w3_ref, b3_ref,
                     o_ref):
    # nn.Dropout is an identity at inference time.
    o_ref[...] = _mlp_compute(x_ref[...], w1_ref, b1_ref, w2_ref, b2_ref,
                              w3_ref, b3_ref).astype(o_ref.dtype)


def _mlp_kernel_train(x_ref, mask_ref, w1_ref, b1_ref, w2_ref, b2_ref,
                      w3_ref, b3_ref, o_ref):
    o_ref[...] = _mlp_compute(x_ref[...], w1_ref, b1_ref, w2_ref, b2_ref,
                              w3_ref, b3_ref,
                              mask=mask_ref[...]).astype(o_ref.dtype)


# --------------------------------------------------------------------------
# Parameters
# --------------------------------------------------------------------------
def init_params(key):
    """PyTorch-style Linear init: U(-1/sqrt(fan_in), 1/sqrt(fan_in))."""
    ks = jax.random.split(key, 6)

    def linear(kw, kb, fan_in, fan_out):
        bound = 1.0 / jnp.sqrt(fan_in)
        w = jax.random.uniform(kw, (fan_out, fan_in), jnp.float32,
                               -bound, bound)
        b = jax.random.uniform(kb, (fan_out,), jnp.float32, -bound, bound)
        return w, b

    w1, b1 = linear(ks[0], ks[1], D0, D1)
    w2, b2 = linear(ks[2], ks[3], D1, D2)
    w3, b3 = linear(ks[4], ks[5], D2, D3)
    return (w1, b1, w2, b2, w3, b3)


def prepare_params(params, weight_dtype=jnp.bfloat16):
    """Transpose + zero-pad weights once (call outside the hot path).

    Weights go to `weight_dtype` (bf16 default: halves weight DMA, native MXU
    rate); biases stay f32 so the elementwise math is f32 everywhere.
    """
    w1, b1, w2, b2, w3, b3 = params

    def padw(w, pin, pout):
        fo, fi = w.shape
        return (jnp.zeros((pin, pout), weight_dtype)
                .at[:fi, :fo].set(w.T.astype(weight_dtype)))

    def padb(b, pout):
        return jnp.zeros((1, pout), jnp.float32).at[0, :b.shape[0]].set(b)

    return (padw(w1, D0, P1), padb(b1, P1),
            padw(w2, P1, P2), padb(b2, P2),
            padw(w3, P2, P3), padb(b3, P3))


# --------------------------------------------------------------------------
# Forward
# --------------------------------------------------------------------------
@functools.partial(jax.jit, static_argnames=("training",))
def model_forward(x, padded_params, training=False, dropout_rng=None):
    """Forward pass.

    x: (B, 784), f32 or bf16 (pass bf16 for minimum HBM traffic on the bf16-
    weight path).  padded_params: output of prepare_params().
    """
    B = x.shape[0]
    w_dtype = padded_params[0].dtype

    bp8 = _round_up(max(B, 1), 8)
    if bp8 <= TILE_B:
        # Always give the grid >= 2 steps so a v7x megacore can shard the
        # batch across both TensorCores.
        tile_b = max(8, _round_up(-(-bp8 // 2), 8))
        Bp = 2 * tile_b
    else:
        tile_b = TILE_B
        Bp = _round_up(bp8, TILE_B)
    grid = (Bp // tile_b,)

    if Bp == B:
        xp = x                              # aligned batch: no wrapper copy of x
    else:
        # Fuse the (optional) cast-to-weight-dtype with the unavoidable pad.
        xp = jnp.pad(x.astype(w_dtype), ((0, Bp - B), (0, 0)))

    out_shape = jax.ShapeDtypeStruct((Bp, P3), w_dtype)
    cparams = pltpu.CompilerParams(
        dimension_semantics=("parallel",),
        vmem_limit_bytes=48 * 1024 * 1024)

    x_spec = pl.BlockSpec((tile_b, D0), lambda i: (i, 0))
    # Constant block index -> weights/biases stay VMEM-resident across steps.
    w_specs = [pl.BlockSpec(p.shape, lambda i: (0, 0)) for p in padded_params]
    out_spec = pl.BlockSpec((tile_b, P3), lambda i: (i, 0))

    flops = 2 * Bp * (D0 * P1 + P1 * P2 + P2 * P3)
    bytes_accessed = (xp.size * xp.dtype.itemsize
                      + sum(p.size * p.dtype.itemsize for p in padded_params)
                      + Bp * P3 * jnp.dtype(w_dtype).itemsize)

    if not training:
        out = pl.pallas_call(
            _mlp_kernel_eval,
            out_shape=out_shape,
            grid_spec=pltpu.PrefetchScalarGridSpec(
                num_scalar_prefetch=0, grid=grid,
                in_specs=[x_spec] + w_specs, out_specs=out_spec),
            compiler_params=cparams,
            cost_estimate=pl.CostEstimate(flops=flops, transcendentals=0,
                                          bytes_accessed=bytes_accessed),
        )(xp, *padded_params)
    else:
        if dropout_rng is None:
            raise ValueError("training=True requires dropout_rng")
        # Inverted-dropout keep/scale mask generated with jax.random (the
        # in-kernel hardware PRNG has no interpret/CPU lowering).
        # TODO(synk): matches torch.nn.Dropout semantics, but the RNG stream is
        # JAX's threefry, not torch's.
        keep = jax.random.bernoulli(dropout_rng, 1.0 - DROPOUT_P, (Bp, P2))
        mask = keep.astype(jnp.float32) * jnp.float32(1.0 / (1.0 - DROPOUT_P))
        mask_spec = pl.BlockSpec((tile_b, P2), lambda i: (i, 0))
        bytes_accessed += mask.size * mask.dtype.itemsize
        out = pl.pallas_call(
            _mlp_kernel_train,
            out_shape=out_shape,
            grid_spec=pltpu.PrefetchScalarGridSpec(
                num_scalar_prefetch=0, grid=grid,
                in_specs=[x_spec, mask_spec] + w_specs, out_specs=out_spec),
            compiler_params=cparams,
            cost_estimate=pl.CostEstimate(flops=flops, transcendentals=0,
                                          bytes_accessed=bytes_accessed),
        )(xp, mask, *padded_params)

    return out[:B, :D3].astype(jnp.float32)


def _reference_forward(x, params):
    """Plain-JAX f32 reference (eval mode)."""
    w1, b1, w2, b2, w3, b3 = params
    h1 = jnp.maximum(x @ w1.T + b1, 0.0)
    h2 = jnp.maximum(h1 @ w2.T + b2, 0.0)
    h3 = jnp.maximum(h2 @ w3.T + b3, 0.0)
    return h3


if __name__ == "__main__":
    key = jax.random.PRNGKey(0)
    kx, kp, kd = jax.random.split(key, 3)
    params = init_params(kp)

    # --- small batch, f32 weights: check against the plain-JAX reference ----
    x_small = jax.random.normal(kx, (8, D0), dtype=jnp.float32)
    pp_f32 = prepare_params(params, weight_dtype=jnp.float32)
    out = jax.block_until_ready(model_forward(x_small, pp_f32, training=False))
    ref = _reference_forward(x_small, params)
    assert out.shape == (8, D3), out.shape
    assert jnp.allclose(out, ref, atol=2e-2, rtol=2e-2), (
        float(jnp.max(jnp.abs(out - ref))))

    # --- medium batch, bf16 weights + bf16 streamed x (fast path) -----------
    x_big = jax.random.normal(kx, (256, D0), dtype=jnp.float32)
    pp_bf16 = prepare_params(params, weight_dtype=jnp.bfloat16)
    out_b = jax.block_until_ready(
        model_forward(x_big.astype(jnp.bfloat16), pp_bf16, training=False))
    ref_b = _reference_forward(x_big, params)
    assert out_b.shape == (256, D3), out_b.shape
    assert jnp.allclose(out_b, ref_b, atol=5e-2, rtol=5e-2), (
        float(jnp.max(jnp.abs(out_b - ref_b))))

    # --- training path (dropout) smoke test ---------------------------------
    out_t = jax.block_until_ready(
        model_forward(x_small, pp_bf16, training=True, dropout_rng=kd))
    assert out_t.shape == (8, D3), out_t.shape
    assert bool(jnp.all(jnp.isfinite(out_t)))

    print("KERNEL_OK")
</pallas_src>

<mosaic_0001>
module attributes {stable_mosaic.version = 11 : i64} {
  func.func @_mlp_kernel_eval(%arg0: i32, %arg1: memref<8x784xf32, #tpu.memory_space<vmem>>, %arg2: memref<784x512xf32, #tpu.memory_space<vmem>>, %arg3: memref<1x512xf32, #tpu.memory_space<vmem>>, %arg4: memref<512x128xf32, #tpu.memory_space<vmem>>, %arg5: memref<1x128xf32, #tpu.memory_space<vmem>>, %arg6: memref<128x128xf32, #tpu.memory_space<vmem>>, %arg7: memref<1x128xf32, #tpu.memory_space<vmem>>, %arg8: memref<8x128xf32, #tpu.memory_space<vmem>>) attributes {dimension_semantics = [#tpu.dimension_semantics<parallel>], iteration_bounds = array<i64: 2>, scalar_prefetch = 0 : i64, scratch_operands = 0 : i64, tpu.core_type = #tpu.core_type<tc>, window_params = [{transform_indices = @transform_0, window_bounds = array<i64: 8, 784>}, {pipeline_mode = #tpu.pipeline_mode<synchronous>, transform_indices = @transform_1, window_bounds = array<i64: 784, 512>}, {pipeline_mode = #tpu.pipeline_mode<synchronous>, transform_indices = @transform_2, window_bounds = array<i64: 1, 512>}, {pipeline_mode = #tpu.pipeline_mode<synchronous>, transform_indices = @transform_3, window_bounds = array<i64: 512, 128>}, {pipeline_mode = #tpu.pipeline_mode<synchronous>, transform_indices = @transform_4, window_bounds = array<i64: 1, 128>}, {pipeline_mode = #tpu.pipeline_mode<synchronous>, transform_indices = @transform_5, window_bounds = array<i64: 128, 128>}, {pipeline_mode = #tpu.pipeline_mode<synchronous>, transform_indices = @transform_6, window_bounds = array<i64: 1, 128>}, {transform_indices = @transform_7, window_bounds = array<i64: 8, 128>}]} {
    %c0 = arith.constant 0 : index
    %c0_0 = arith.constant 0 : index
    %0 = vector.load %arg1[%c0, %c0_0] : memref<8x784xf32, #tpu.memory_space<vmem>>, vector<8x784xf32>
    %c0_1 = arith.constant 0 : index
    %c0_2 = arith.constant 0 : index
    %1 = vector.load %arg2[%c0_1, %c0_2] : memref<784x512xf32, #tpu.memory_space<vmem>>, vector<784x512xf32>
    %cst = arith.constant dense<0.000000e+00> : vector<8x512xf32>
    %2 = tpu.matmul %0, %1, %cst {dimension_numbers = #tpu.dot_dimension_numbers<[1], [0], [0], [1], [0, 0, 1, 1], [], []>} : vector<8x784xf32>, vector<784x512xf32>, vector<8x512xf32> -> vector<8x512xf32>
    %c0_3 = arith.constant 0 : index
    %c0_4 = arith.constant 0 : index
    %3 = vector.load %arg3[%c0_3, %c0_4] : memref<1x512xf32, #tpu.memory_space<vmem>>, vector<1x512xf32>
    %4 = vector.broadcast %3 : vector<1x512xf32> to vector<8x512xf32>
    %5 = arith.addf %2, %4 : vector<8x512xf32>
    %cst_5 = arith.constant 0.000000e+00 : f32
    %6 = vector.broadcast %cst_5 : f32 to vector<8x512xf32>
    %7 = arith.maximumf %5, %6 : vector<8x512xf32>
    %c0_6 = arith.constant 0 : index
    %c0_7 = arith.constant 0 : index
    %8 = vector.load %arg4[%c0_6, %c0_7] : memref<512x128xf32, #tpu.memory_space<vmem>>, vector<512x128xf32>
    %cst_8 = arith.constant dense<0.000000e+00> : vector<8x128xf32>
    %9 = tpu.matmul %7, %8, %cst_8 {dimension_numbers = #tpu.dot_dimension_numbers<[1], [0], [0], [1], [0, 0, 1, 1], [], []>} : vector<8x512xf32>, vector<512x128xf32>, vector<8x128xf32> -> vector<8x128xf32>
    %c0_9 = arith.constant 0 : index
    %c0_10 = arith.constant 0 : index
    %10 = vector.load %arg5[%c0_9, %c0_10] : memref<1x128xf32, #tpu.memory_space<vmem>>, vector<1x128xf32>
    %11 = vector.broadcast %10 : vector<1x128xf32> to vector<8x128xf32>
    %12 = arith.addf %9, %11 : vector<8x128xf32>
    %cst_11 = arith.constant 0.000000e+00 : f32
    %13 = vector.broadcast %cst_11 : f32 to vector<8x128xf32>
    %14 = arith.maximumf %12, %13 : vector<8x128xf32>
    %c0_12 = arith.constant 0 : index
    %c0_13 = arith.constant 0 : index
    %15 = vector.load %arg6[%c0_12, %c0_13] : memref<128x128xf32, #tpu.memory_space<vmem>>, vector<128x128xf32>
    %cst_14 = arith.constant dense<0.000000e+00> : vector<8x128xf32>
    %16 = tpu.matmul %14, %15, %cst_14 {dimension_numbers = #tpu.dot_dimension_numbers<[1], [0], [0], [1], [0, 0, 1, 1], [], []>} : vector<8x128xf32>, vector<128x128xf32>, vector<8x128xf32> -> vector<8x128xf32>
    %c0_15 = arith.constant 0 : index
    %c0_16 = arith.constant 0 : index
    %17 = vector.load %arg7[%c0_15, %c0_16] : memref<1x128xf32, #tpu.memory_space<vmem>>, vector<1x128xf32>
    %18 = vector.broadcast %17 : vector<1x128xf32> to vector<8x128xf32>
    %19 = arith.addf %16, %18 : vector<8x128xf32>
    %cst_17 = arith.constant 0.000000e+00 : f32
    %20 = vector.broadcast %cst_17 : f32 to vector<8x128xf32>
    %21 = arith.maximumf %19, %20 : vector<8x128xf32>
    %c0_18 = arith.constant 0 : index
    %c0_19 = arith.constant 0 : index
    %22 = vector.load %arg8[%c0_18, %c0_19] : memref<8x128xf32, #tpu.memory_space<vmem>>, vector<8x128xf32>
    tpu.vector_store %arg8[%c0_18, %c0_19], %21 {strides = array<i32>} : memref<8x128xf32, #tpu.memory_space<vmem>>, vector<8x128xf32>,
    return
  }
  func.func @transform_0(%arg0: i32) -> (i32, i32) {
    %c0_i32 = arith.constant 0 : i32
    %c0_i32_0 = arith.constant 0 : i32
    return %arg0, %c0_i32 : i32, i32
  }
  func.func @transform_1(%arg0: i32) -> (i32, i32) {
    %c0_i32 = arith.constant 0 : i32
    %c0_i32_0 = arith.constant 0 : i32
    %c0_i32_1 = arith.constant 0 : i32
    return %c0_i32, %c0_i32_0 : i32, i32
  }
  func.func @transform_2(%arg0: i32) -> (i32, i32) {
    %c0_i32 = arith.constant 0 : i32
    %c0_i32_0 = arith.constant 0 : i32
    %c0_i32_1 = arith.constant 0 : i32
    return %c0_i32, %c0_i32_0 : i32, i32
  }
  func.func @transform_3(%arg0: i32) -> (i32, i32) {
    %c0_i32 = arith.constant 0 : i32
    %c0_i32_0 = arith.constant 0 : i32
    %c0_i32_1 = arith.constant 0 : i32
    return %c0_i32, %c0_i32_0 : i32, i32
  }
  func.func @transform_4(%arg0: i32) -> (i32, i32) {
    %c0_i32 = arith.constant 0 : i32
    %c0_i32_0 = arith.constant 0 : i32
    %c0_i32_1 = arith.constant 0 : i32
    return %c0_i32, %c0_i32_0 : i32, i32
  }
  func.func @transform_5(%arg0: i32) -> (i32, i32) {
    %c0_i32 = arith.constant 0 : i32
    %c0_i32_0 = arith.constant 0 : i32
    %c0_i32_1 = arith.constant 0 : i32
    return %c0_i32, %c0_i32_0 : i32, i32
  }
  func.func @transform_6(%arg0: i32) -> (i32, i32) {
    %c0_i32 = arith.constant 0 : i32
    %c0_i32_0 = arith.constant 0 : i32
    %c0_i32_1 = arith.constant 0 : i32
    return %c0_i32, %c0_i32_0 : i32, i32
  }
  func.func @transform_7(%arg0: i32) -> (i32, i32) {
    %c0_i32 = arith.constant 0 : i32
    %c0_i32_0 = arith.constant 0 : i32
    return %arg0, %c0_i32 : i32, i32
  }
}

</mosaic_0001>

<llo_original>
// kernel: model_forward.1
$region0: #{model_forward.1}
  #allocation0 [shape = 'u32[]', space=smem, size = 0x4, offset = 0x4, fixed_abs, tag = 'smem constant byte address 0x4 - core index']
  #allocation1 [shape = 'u32[144,128]{1,0:T(1,128)}', space=vmem, size = 0x12000, scoped, tag = 'internal scratch']
  %s0 = inlined_call_operand.vmem [shape: f32[16,784], index: 0, kind: input, shape index: {}]
  %s1 = inlined_call_operand.hbm [shape: f32[784,512], index: 1, kind: input, shape index: {}]
  %s2 = inlined_call_operand.hbm [shape: f32[1,512], index: 2, kind: input, shape index: {}]
  %s3 = inlined_call_operand.hbm [shape: f32[512,128], index: 3, kind: input, shape index: {}]
  %s4 = inlined_call_operand.hbm [shape: f32[1,128], index: 4, kind: input, shape index: {}]
  %s5 = inlined_call_operand.hbm [shape: f32[128,128], index: 5, kind: input, shape index: {}]
  %s6 = inlined_call_operand.hbm [shape: f32[1,128], index: 6, kind: input, shape index: {}]
  %s7 = inlined_call_operand.vmem [shape: f32[16,128], index: 7, kind: output, shape index: {}]
  %s8 = sld [smem:[#allocation0]]
  $region85: #{model_forward.1} parent=0
    _
  %s10 = ssub.s32 1, %s8
  %s11 = scalar_select 0, %s10, %s8
  $region1: #{model_forward.1} parent=0
    #allocation2 [shape = 'u8[1605632]{0}', space=vmem, size = 0x188000, scoped, tag = 'input window, operand 1, single buffered']
    #allocation3 [shape = 's32[2]{0}', space=sflag, size = 0x8, scoped, tag = 'scoped memory for model_forward.1']
    #allocation4 [shape = 'u8[2048]{0}', space=vmem, size = 0x800, scoped, tag = 'input window, operand 2, single buffered']
    #allocation5 [shape = 's32[1]{0}', space=sflag, size = 0x4, scoped, tag = 'scoped memory for model_forward.1']
    #allocation6 [shape = 'u8[262144]{0}', space=vmem, size = 0x40000, scoped, tag = 'input window, operand 3, single buffered']
    #allocation7 [shape = 'u8[512]{0}', space=vmem, size = 0x400, scoped, tag = 'input window, operand 4, single buffered']
    #allocation8 [shape = 's32[1]{0}', space=sflag, size = 0x4, scoped, tag = 'scoped memory for model_forward.1']
    #allocation9 [shape = 'u8[65536]{0}', space=vmem, size = 0x10000, scoped, tag = 'input window, operand 5, single buffered']
    #allocation10 [shape = 'u8[512]{0}', space=vmem, size = 0x400, scoped, tag = 'input window, operand 6, single buffered']
    #allocation11 [shape = 's32[1]{0}', space=sflag, size = 0x4, scoped, tag = 'scoped memory for model_forward.1']
    %12 = vsyncpa [#allocation3], 0
    %13 = vsyncpa [#allocation5], 0
    %14 = vsyncpa [#allocation8], 0
    %15 = vsyncpa [#allocation11], 0
    loop: start=0, step=1, limit=4
    $region2: #{model_forward.1} parent=1 // loop_pre_header
      _
    $region3: #{model_forward.1} parent=1 // loop_header
      %s17 = sphi 0, %s21
      %p18 = scmp.ge.s32.totalorder %s17, 4
      %s27 = sphi 0, %s29
      %s30 = sphi 0, %s27
      %s31 = sphi 0, %s30
      %s47 = sphi 0, %s31
      %s51 = sphi 0, %s51
      %s53 = sphi 0, %s51
      %s54 = sphi 0, %s53
      %s68 = sphi 0, %s54
      %s72 = sphi 0, %s72
      %s74 = sphi 0, %s72
      %s75 = sphi 0, %s74
      %s89 = sphi 0, %s75
      %s93 = sphi 0, %s93
      %s95 = sphi 0, %s93
      %s96 = sphi 0, %s95
      %s110 = sphi 0, %s96
      %s114 = sphi 0, %s114
      %s116 = sphi 0, %s114
      %s117 = sphi 0, %s116
      %s131 = sphi 0, %s117
      %s135 = sphi 0, %s135
      %s137 = sphi 0, %s135
      %s138 = sphi 0, %s137
      %s152 = sphi 0, %s138
      %s156 = sphi 0, %s156
      %s158 = sphi 0, %s156
      %s159 = sphi 0, %s158
      %s173 = sphi 0, %s159
      %s179 = sphi 0, %s181
      %s182 = sphi 0, %s179
      %s183 = sphi 0, %s182
      %s199 = sphi 0, %s183
    $region4: #{model_forward.1} parent=1 // loop_header_branch
      %20 = sbr.rel (%p18) target = $region8
    $region5: #{model_forward.1} parent=1 // loop_body
      %s22 = ssub.s32 %s17, 1
      %s23 = ssub.s32 %s17, 2
      %s24 = sadd.s32 %s17, 1
      %s25 = ssub.s32 %s17, %s24
      %p26 = scmp.eq.s32.totalorder %s25, 0
      %s28 = sadd.s32 %s27, 1
      %s29 = scalar_select %p26, %s27, %s28
      %p32 = pneg %p26
      %p33 = scmp.eq.s32.totalorder %s17, 1
      %p34 = por %p32, %p33
      %p35 = scmp.ne.s32.totalorder %s27, %s30
      %p36 = scmp.eq.s32.totalorder %s17, 0
      %p37 = por %p35, %p36
      %p38 = scmp.ne.s32.totalorder %s27, %s30
      %p39 = scmp.eq.s32.totalorder %s22, 1
      %p40 = por %p38, %p39
      %p41 = scmp.ne.s32.totalorder %s30, %s31
      %p42 = scmp.eq.s32.totalorder %s22, 0
      %p43 = por %p41, %p42
      %p44 = scmp.ne.s32.totalorder %s30, %s31
      %p45 = scmp.eq.s32.totalorder %s23, 1
      %p46 = por %p44, %p45
      %p48 = scmp.ne.s32.totalorder %s31, %s47
      %p49 = scmp.eq.s32.totalorder %s23, 0
      %p50 = por %p48, %p49
      %s52 = sadd.s32 %s51, 1
      %p55 = scmp.eq.s32.totalorder %s17, 1
      %p56 = scmp.ne.s32.totalorder %s51, %s53
      %p57 = scmp.eq.s32.totalorder %s17, 0
      %p58 = por %p56, %p57
      %p59 = scmp.ne.s32.totalorder %s51, %s53
      %p60 = scmp.eq.s32.totalorder %s22, 1
      %p61 = por %p59, %p60
      %p62 = scmp.ne.s32.totalorder %s53, %s54
      %p63 = scmp.eq.s32.totalorder %s22, 0
      %p64 = por %p62, %p63
      %p65 = scmp.ne.s32.totalorder %s53, %s54
      %p66 = scmp.eq.s32.totalorder %s23, 1
      %p67 = por %p65, %p66
      %p69 = scmp.ne.s32.totalorder %s54, %s68
      %p70 = scmp.eq.s32.totalorder %s23, 0
      %p71 = por %p69, %p70
      %s73 = sadd.s32 %s72, 1
      %p76 = scmp.eq.s32.totalorder %s17, 1
      %p77 = scmp.ne.s32.totalorder %s72, %s74
      %p78 = scmp.eq.s32.totalorder %s17, 0
      %p79 = por %p77, %p78
      %p80 = scmp.ne.s32.totalorder %s72, %s74
      %p81 = scmp.eq.s32.totalorder %s22, 1
      %p82 = por %p80, %p81
      %p83 = scmp.ne.s32.totalorder %s74, %s75
      %p84 = scmp.eq.s32.totalorder %s22, 0
      %p85 = por %p83, %p84
      %p86 = scmp.ne.s32.totalorder %s74, %s75
      %p87 = scmp.eq.s32.totalorder %s23, 1
      %p88 = por %p86, %p87
      %p90 = scmp.ne.s32.totalorder %s75, %s89
      %p91 = scmp.eq.s32.totalorder %s23, 0
      %p92 = por %p90, %p91
      %s94 = sadd.s32 %s93, 1
      %p97 = scmp.eq.s32.totalorder %s17, 1
      %p98 = scmp.ne.s32.totalorder %s93, %s95
      %p99 = scmp.eq.s32.totalorder %s17, 0
      %p100 = por %p98, %p99
      %p101 = scmp.ne.s32.totalorder %s93, %s95
      %p102 = scmp.eq.s32.totalorder %s22, 1
      %p103 = por %p101, %p102
      %p104 = scmp.ne.s32.totalorder %s95, %s96
      %p105 = scmp.eq.s32.totalorder %s22, 0
      %p106 = por %p104, %p105
      %p107 = scmp.ne.s32.totalorder %s95, %s96
      %p108 = scmp.eq.s32.totalorder %s23, 1
      %p109 = por %p107, %p108
      %p111 = scmp.ne.s32.totalorder %s96, %s110
      %p112 = scmp.eq.s32.totalorder %s23, 0
      %p113 = por %p111, %p112
      %s115 = sadd.s32 %s114, 1
      %p118 = scmp.eq.s32.totalorder %s17, 1
      %p119 = scmp.ne.s32.totalorder %s114, %s116
      %p120 = scmp.eq.s32.totalorder %s17, 0
      %p121 = por %p119, %p120
      %p122 = scmp.ne.s32.totalorder %s114, %s116
      %p123 = scmp.eq.s32.totalorder %s22, 1
      %p124 = por %p122, %p123
      %p125 = scmp.ne.s32.totalorder %s116, %s117
      %p126 = scmp.eq.s32.totalorder %s22, 0
      %p127 = por %p125, %p126
      %p128 = scmp.ne.s32.totalorder %s116, %s117
      %p129 = scmp.eq.s32.totalorder %s23, 1
      %p130 = por %p128, %p129
      %p132 = scmp.ne.s32.totalorder %s117, %s131
      %p133 = scmp.eq.s32.totalorder %s23, 0
      %p134 = por %p132, %p133
      %s136 = sadd.s32 %s135, 1
      %p139 = scmp.eq.s32.totalorder %s17, 1
      %p140 = scmp.ne.s32.totalorder %s135, %s137
      %p141 = scmp.eq.s32.totalorder %s17, 0
      %p142 = por %p140, %p141
      %p143 = scmp.ne.s32.totalorder %s135, %s137
      %p144 = scmp.eq.s32.totalorder %s22, 1
      %p145 = por %p143, %p144
      %p146 = scmp.ne.s32.totalorder %s137, %s138
      %p147 = scmp.eq.s32.totalorder %s22, 0
      %p148 = por %p146, %p147
      %p149 = scmp.ne.s32.totalorder %s137, %s138
      %p150 = scmp.eq.s32.totalorder %s23, 1
      %p151 = por %p149, %p150
      %p153 = scmp.ne.s32.totalorder %s138, %s152
      %p154 = scmp.eq.s32.totalorder %s23, 0
      %p155 = por %p153, %p154
      %s157 = sadd.s32 %s156, 1
      %p160 = scmp.eq.s32.totalorder %s17, 1
      %p161 = scmp.ne.s32.totalorder %s156, %s158
      %p162 = scmp.eq.s32.totalorder %s17, 0
      %p163 = por %p161, %p162
      %p164 = scmp.ne.s32.totalorder %s156, %s158
      %p165 = scmp.eq.s32.totalorder %s22, 1
      %p166 = por %p164, %p165
      %p167 = scmp.ne.s32.totalorder %s158, %s159
      %p168 = scmp.eq.s32.totalorder %s22, 0
      %p169 = por %p167, %p168
      %p170 = scmp.ne.s32.totalorder %s158, %s159
      %p171 = scmp.eq.s32.totalorder %s23, 1
      %p172 = por %p170, %p171
      %p174 = scmp.ne.s32.totalorder %s159, %s173
      %p175 = scmp.eq.s32.totalorder %s23, 0
      %p176 = por %p174, %p175
      %s177 = ssub.s32 %s17, %s24
      %p178 = scmp.eq.s32.totalorder %s177, 0
      %s180 = sadd.s32 %s179, 1
      %s181 = scalar_select %p178, %s179, %s180
      %p184 = pneg %p178
      %p185 = scmp.eq.s32.totalorder %s17, 1
      %p186 = por %p184, %p185
      %p187 = scmp.ne.s32.totalorder %s179, %s182
      %p188 = scmp.eq.s32.totalorder %s17, 0
      %p189 = por %p187, %p188
      %p190 = scmp.ne.s32.totalorder %s179, %s182
      %p191 = scmp.eq.s32.totalorder %s22, 1
      %p192 = por %p190, %p191
      %p193 = scmp.ne.s32.totalorder %s182, %s183
      %p194 = scmp.eq.s32.totalorder %s22, 0
      %p195 = por %p193, %p194
      %p196 = scmp.ne.s32.totalorder %s182, %s183
      %p197 = scmp.eq.s32.totalorder %s23, 1
      %p198 = por %p196, %p197
      %p200 = scmp.ne.s32.totalorder %s183, %s199
      %p201 = scmp.eq.s32.totalorder %s23, 0
      %p202 = por %p200, %p201
      %p203 = scmp.le.s32.totalorder 1, %s17
      %p204 = scmp.lt.s32.totalorder %s17, 3
      %p205 = pnand %p203, %p204
      %p206 = pneg %p205
      // Predicated region
      $region9: #{model_forward.1} parent=5 // pred_check
        _
      $region10: #{model_forward.1} parent=5 // pred_check_branch
        %208 = sbr.rel (%p205) target = $region12
      $region11: #{model_forward.1} parent=5 // pred_region
        %s209 = ssub.s32 %s17, 1
        // Predicated region
        $region13: #{model_forward.1} parent=11 // pred_check
          %p210 = pneg %p64
        $region14: #{model_forward.1} parent=11 // pred_check_branch
          %212 = sbr.rel (%p210) target = $region16
        $region15: #{model_forward.1} parent=11 // pred_region
          %s214 = ssub.s32 50176, 50176
          %215 = vsyncadd [#allocation3], %s214
          %s216 = sshll.u32 [#allocation2], 4
          %s217 = int_to_ptr.vmem [resolvable:$true] %s216
          %222 = dma.hbm_to_vmem [thread:$0]  %s1, 50176, %s217, [#allocation3], 512, 512, 32
        $region16: #{model_forward.1} parent=11 // pred_fallthru
          _
        // Predicated region
        $region17: #{model_forward.1} parent=11 // pred_check
          %p223 = pneg %p85
        $region18: #{model_forward.1} parent=11 // pred_check_branch
          %225 = sbr.rel (%p223) target = $region20
        $region19: #{model_forward.1} parent=11 // pred_region
          %s227 = ssub.s32 64, 64
          %228 = vsyncadd [#allocation5], %s227
          %s230 = sshll.u32 [#allocation4], 4
          %s231 = int_to_ptr.vmem [resolvable:$true] %s230
          %233 = dma.hbm_to_vmem [thread:$0]  %s2, 64, %s231, [#allocation5]
        $region20: #{model_forward.1} parent=11 // pred_fallthru
          _
        // Predicated region
        $region21: #{model_forward.1} parent=11 // pred_check
          %p234 = pneg %p106
        $region22: #{model_forward.1} parent=11 // pred_check_branch
          %236 = sbr.rel (%p234) target = $region24
        $region23: #{model_forward.1} parent=11 // pred_region
          %s238 = ssub.s32 8192, 8192
          %239 = vsyncadd [#allocation5], %s238
          %s240 = sshll.u32 [#allocation6], 4
          %s241 = int_to_ptr.vmem [resolvable:$true] %s240
          %246 = dma.hbm_to_vmem [thread:$0]  %s3, 8192, %s241, [#allocation5], 128, 128, 8
        $region24: #{model_forward.1} parent=11 // pred_fallthru
          _
        // Predicated region
        $region25: #{model_forward.1} parent=11 // pred_check
          %p247 = pneg %p127
        $region26: #{model_forward.1} parent=11 // pred_check_branch
          %249 = sbr.rel (%p247) target = $region28
        $region27: #{model_forward.1} parent=11 // pred_region
          %s251 = ssub.s32 16, 16
          %252 = vsyncadd [#allocation8], %s251
          %s254 = sshll.u32 [#allocation7], 4
          %s255 = int_to_ptr.vmem [resolvable:$true] %s254
          %257 = dma.hbm_to_vmem [thread:$0]  %s4, 16, %s255, [#allocation8]
        $region28: #{model_forward.1} parent=11 // pred_fallthru
          _
        // Predicated region
        $region29: #{model_forward.1} parent=11 // pred_check
          %p258 = pneg %p148
        $region30: #{model_forward.1} parent=11 // pred_check_branch
          %260 = sbr.rel (%p258) target = $region32
        $region31: #{model_forward.1} parent=11 // pred_region
          %s262 = ssub.s32 2048, 2048
          %263 = vsyncadd [#allocation8], %s262
          %s264 = sshll.u32 [#allocation9], 4
          %s265 = int_to_ptr.vmem [resolvable:$true] %s264
          %270 = dma.hbm_to_vmem [thread:$0]  %s5, 2048, %s265, [#allocation8], 128, 128, 8
        $region32: #{model_forward.1} parent=11 // pred_fallthru
          _
        // Predicated region
        $region33: #{model_forward.1} parent=11 // pred_check
          %p271 = pneg %p169
        $region34: #{model_forward.1} parent=11 // pred_check_branch
          %273 = sbr.rel (%p271) target = $region36
        $region35: #{model_forward.1} parent=11 // pred_region
          %s275 = ssub.s32 16, 16
          %276 = vsyncadd [#allocation11], %s275
          %s278 = sshll.u32 [#allocation10], 4
          %s279 = int_to_ptr.vmem [resolvable:$true] %s278
          %281 = dma.hbm_to_vmem [thread:$0]  %s6, 16, %s279, [#allocation11]
        $region36: #{model_forward.1} parent=11 // pred_fallthru
          _
      $region12: #{model_forward.1} parent=5 // pred_fallthru
        _
      %p282 = scmp.lt.s32.totalorder %s17, 2
      // Predicated region
      $region37: #{model_forward.1} parent=5 // pred_check
        %p283 = pneg %p282
      $region38: #{model_forward.1} parent=5 // pred_check_branch
        %285 = sbr.rel (%p283) target = $region40
      $region39: #{model_forward.1} parent=5 // pred_region
        // Predicated region
        $region41: #{model_forward.1} parent=39 // pred_check
          %p286 = pneg %p37
        $region42: #{model_forward.1} parent=39 // pred_check_branch
          %288 = sbr.rel (%p286) target = $region44
        $region43: #{model_forward.1} parent=39 // pred_region
          %p289 = scmp.lt.s32.totalorder %s17, 1
          %s290 = scalar_select %p289, %s17, 1
          %s291 = smul.addr %s290, 7
          %s292 = smul.addr %s291, 8
          %s293 = scalar_lea.vmem %s0, %s292
        $region44: #{model_forward.1} parent=39 // pred_fallthru
          _
      $region40: #{model_forward.1} parent=5 // pred_fallthru
        _
      %p294 = scmp.le.s32.totalorder 1, %s17
      %p295 = scmp.lt.s32.totalorder %s17, 3
      %p296 = pnand %p294, %p295
      %p297 = pneg %p296
      // Predicated region
      $region45: #{model_forward.1} parent=5 // pred_check
        _
      $region46: #{model_forward.1} parent=5 // pred_check_branch
        %299 = sbr.rel (%p296) target = $region48
      $region47: #{model_forward.1} parent=5 // pred_region
        %s300 = ssub.s32 %s17, 1
        // Predicated region
        $region49: #{model_forward.1} parent=47 // pred_check
          %p301 = pneg %p64
        $region50: #{model_forward.1} parent=47 // pred_check_branch
          %303 = sbr.rel (%p301) target = $region52
        $region51: #{model_forward.1} parent=47 // pred_region
          %304 = dma.done [#allocation3], 50176
        $region52: #{model_forward.1} parent=47 // pred_fallthru
          _
        // Predicated region
        $region53: #{model_forward.1} parent=47 // pred_check
          %p305 = pneg %p85
        $region54: #{model_forward.1} parent=47 // pred_check_branch
          %307 = sbr.rel (%p305) target = $region56
        $region55: #{model_forward.1} parent=47 // pred_region
          %308 = dma.done [#allocation5], 64
        $region56: #{model_forward.1} parent=47 // pred_fallthru
          _
        // Predicated region
        $region57: #{model_forward.1} parent=47 // pred_check
          %p309 = pneg %p106
        $region58: #{model_forward.1} parent=47 // pred_check_branch
          %311 = sbr.rel (%p309) target = $region60
        $region59: #{model_forward.1} parent=47 // pred_region
          %312 = dma.done [#allocation5], 8192
        $region60: #{model_forward.1} parent=47 // pred_fallthru
          _
        // Predicated region
        $region61: #{model_forward.1} parent=47 // pred_check
          %p313 = pneg %p127
        $region62: #{model_forward.1} parent=47 // pred_check_branch
          %315 = sbr.rel (%p313) target = $region64
        $region63: #{model_forward.1} parent=47 // pred_region
          %316 = dma.done [#allocation8], 16
        $region64: #{model_forward.1} parent=47 // pred_fallthru
          _
        // Predicated region
        $region65: #{model_forward.1} parent=47 // pred_check
          %p317 = pneg %p148
        $region66: #{model_forward.1} parent=47 // pred_check_branch
          %319 = sbr.rel (%p317) target = $region68
        $region67: #{model_forward.1} parent=47 // pred_region
          %320 = dma.done [#allocation8], 2048
        $region68: #{model_forward.1} parent=47 // pred_fallthru
          _
        // Predicated region
        $region69: #{model_forward.1} parent=47 // pred_check
          %p321 = pneg %p169
        $region70: #{model_forward.1} parent=47 // pred_check_branch
          %323 = sbr.rel (%p321) target = $region72
        $region71: #{model_forward.1} parent=47 // pred_region
          %324 = dma.done [#allocation11], 16
        $region72: #{model_forward.1} parent=47 // pred_fallthru
          _
        %p325 = scmp.lt.s32.totalorder %s22, 1
        %s326 = scalar_select %p325, %s22, 1
        %s327 = smul.addr %s326, 7
        %s328 = smul.addr %s327, 8
        %s329 = scalar_lea.vmem %s0, %s328
        %p330 = pneg %p43
        %p331 = pneg %p40
        %p332 = pneg %p64
        %p333 = pneg %p61
        %p334 = pneg %p85
        %p335 = pneg %p82
        %p336 = pneg %p106
        %p337 = pneg %p103
        %p338 = pneg %p127
        %p339 = pneg %p124
        %p340 = pneg %p148
        %p341 = pneg %p145
        %p342 = pneg %p169
        %p343 = pneg %p166
        %p344 = pneg %p195
        %p345 = pneg %p192
        %p346 = scmp.lt.s32.totalorder %s22, 1
        %s347 = scalar_select %p346, %s22, 1
        %s348 = smul.addr %s347, 8
        %s349 = scalar_lea.vmem %s7, %s348
        %p350 = scmp.lt.s32.totalorder %s22, 1
        %s351 = scalar_select %p350, %s22, 1
        %s352 = smul.addr %s351, 7
        %s353 = smul.addr %s352, 8
        %s354 = scalar_lea.vmem %s0, %s353
        %p355 = scmp.lt.s32.totalorder %s22, 1
        %s356 = scalar_select %p355, %s22, 1
        %s357 = smul.addr %s356, 8
        %s358 = scalar_lea.vmem %s7, %s357
        %v359 = vld [vmem:[%s354] sm:$0xff]
        %v360 = vld [vmem:[%s354 + $0x8] sm:$0xff]
        %v361 = vld [vmem:[%s354 + $0x10] sm:$0xff]
        %v362 = vld [vmem:[%s354 + $0x18] sm:$0xff]
        %v363 = vld [vmem:[%s354 + $0x20] sm:$0xff]
        %v364 = vld [vmem:[%s354 + $0x28] sm:$0xff]
        %v365 = vld [vmem:[%s354 + $0x30] sm:$0xff]
        %v366 = vld [vmem:[#allocation2] sm:$0xff]
        %v367 = vld [vmem:[#allocation2 + $0x8] sm:$0xff]
        %v368 = vld [vmem:[#allocation2 + $0x10] sm:$0xff]
        %v369 = vld [vmem:[#allocation2 + $0x18] sm:$0xff]
        %v370 = vld [vmem:[#allocation2 + $0x20] sm:$0xff]
        %v371 = vld [vmem:[#allocation2 + $0x28] sm:$0xff]
        %v372 = vld [vmem:[#allocation2 + $0x30] sm:$0xff]
        %v373 = vld [vmem:[#allocation2 + $0x38] sm:$0xff]
        %v374 = vld [vmem:[#allocation2 + $0x40] sm:$0xff]
        %v375 = vld [vmem:[#allocation2 + $0x48] sm:$0xff]
        %v376 = vld [vmem:[#allocation2 + $0x50] sm:$0xff]
        %v377 = vld [vmem:[#allocation2 + $0x58] sm:$0xff]
        %v378 = vld [vmem:[#allocation2 + $0x60] sm:$0xff]
        %v379 = vld [vmem:[#allocation2 + $0x68] sm:$0xff]
        %v380 = vld [vmem:[#allocation2 + $0x70] sm:$0xff]
        %v381 = vld [vmem:[#allocation2 + $0x78] sm:$0xff]
        %v382 = vld [vmem:[#allocation2 + $0x80] sm:$0xff]
        %v383 = vld [vmem:[#allocation2 + $0x88] sm:$0xff]
        %v384 = vld [vmem:[#allocation2 + $0x90] sm:$0xff]
        %v385 = vld [vmem:[#allocation2 + $0x98] sm:$0xff]
        %v386 = vld [vmem:[#allocation2 + $0xa0] sm:$0xff]
        %v387 = vld [vmem:[#allocation2 + $0xa8] sm:$0xff]
        %v388 = vld [vmem:[#allocation2 + $0xb0] sm:$0xff]
        %v389 = vld [vmem:[#allocation2 + $0xb8] sm:$0xff]
        %v390 = vld [vmem:[#allocation2 + $0xc0] sm:$0xff]
        %v391 = vld [vmem:[#allocation2 + $0xc8] sm:$0xff]
        %v392 = vld [vmem:[#allocation2 + $0xd0] sm:$0xff]
        %v393 = vld [vmem:[#allocation2 + $0xd8] sm:$0xff]
        %v394 = vld [vmem:[#allocation2 + $0xe0] sm:$0xff]
        %v395 = vld [vmem:[#allocation2 + $0xe8] sm:$0xff]
        %v396 = vld [vmem:[#allocation2 + $0xf0] sm:$0xff]
        %v397 = vld [vmem:[#allocation2 + $0xf8] sm:$0xff]
        %v398 = vld [vmem:[#allocation2 + $0x100] sm:$0xff]
        %v399 = vld [vmem:[#allocation2 + $0x108] sm:$0xff]
        %v400 = vld [vmem:[#allocation2 + $0x110] sm:$0xff]
        %v401 = vld [vmem:[#allocation2 + $0x118] sm:$0xff]
        %v402 = vld [vmem:[#allocation2 + $0x120] sm:$0xff]
        %v403 = vld [vmem:[#allocation2 + $0x128] sm:$0xff]
        %v404 = vld [vmem:[#allocation2 + $0x130] sm:$0xff]
        %v405 = vld [vmem:[#allocation2 + $0x138] sm:$0xff]
        %v406 = vld [vmem:[#allocation2 + $0x140] sm:$0xff]
        %v407 = vld [vmem:[#allocation2 + $0x148] sm:$0xff]
        %v408 = vld [vmem:[#allocation2 + $0x150] sm:$0xff]
        %v409 = vld [vmem:[#allocation2 + $0x158] sm:$0xff]
        %v410 = vld [vmem:[#allocation2 + $0x160] sm:$0xff]
        %v411 = vld [vmem:[#allocation2 + $0x168] sm:$0xff]
        %v412 = vld [vmem:[#allocation2 + $0x170] sm:$0xff]
        %v413 = vld [vmem:[#allocation2 + $0x178] sm:$0xff]
        %v414 = vld [vmem:[#allocation2 + $0x180] sm:$0xff]
        %v415 = vld [vmem:[#allocation2 + $0x188] sm:$0xff]
        %v416 = vld [vmem:[#allocation2 + $0x190] sm:$0xff]
        %v417 = vld [vmem:[#allocation2 + $0x198] sm:$0xff]
        %v418 = vld [vmem:[#allocation2 + $0x1a0] sm:$0xff]
        %v419 = vld [vmem:[#allocation2 + $0x1a8] sm:$0xff]
        %v420 = vld [vmem:[#allocation2 + $0x1b0] sm:$0xff]
        %v421 = vld [vmem:[#allocation2 + $0x1b8] sm:$0xff]
        %v422 = vld [vmem:[#allocation2 + $0x1c0] sm:$0xff]
        %v423 = vld [vmem:[#allocation2 + $0x1c8] sm:$0xff]
        %v424 = vld [vmem:[#allocation2 + $0x1d0] sm:$0xff]
        %v425 = vld [vmem:[#allocation2 + $0x1d8] sm:$0xff]
        %v426 = vld [vmem:[#allocation2 + $0x1e0] sm:$0xff]
        %v427 = vld [vmem:[#allocation2 + $0x1e8] sm:$0xff]
        %v428 = vld [vmem:[#allocation2 + $0x1f0] sm:$0xff]
        %v429 = vld [vmem:[#allocation2 + $0x1f8] sm:$0xff]
        %v430 = vld [vmem:[#allocation2 + $0x200] sm:$0xff]
        %v431 = vld [vmem:[#allocation2 + $0x208] sm:$0xff]
        %v432 = vld [vmem:[#allocation2 + $0x210] sm:$0xff]
        %v433 = vld [vmem:[#allocation2 + $0x218] sm:$0xff]
        %v434 = vld [vmem:[#allocation2 + $0x220] sm:$0xff]
        %v435 = vld [vmem:[#allocation2 + $0x228] sm:$0xff]
        %v436 = vld [vmem:[#allocation2 + $0x230] sm:$0xff]
        %v437 = vld [vmem:[#allocation2 + $0x238] sm:$0xff]
        %v438 = vld [vmem:[#allocation2 + $0x240] sm:$0xff]
        %v439 = vld [vmem:[#allocation2 + $0x248] sm:$0xff]
        %v440 = vld [vmem:[#allocation2 + $0x250] sm:$0xff]
        %v441 = vld [vmem:[#allocation2 + $0x258] sm:$0xff]
        %v442 = vld [vmem:[#allocation2 + $0x260] sm:$0xff]
        %v443 = vld [vmem:[#allocation2 + $0x268] sm:$0xff]
        %v444 = vld [vmem:[#allocation2 + $0x270] sm:$0xff]
        %v445 = vld [vmem:[#allocation2 + $0x278] sm:$0xff]
        %v446 = vld [vmem:[#allocation2 + $0x280] sm:$0xff]
        %v447 = vld [vmem:[#allocation2 + $0x288] sm:$0xff]
        %v448 = vld [vmem:[#allocation2 + $0x290] sm:$0xff]
        %v449 = vld [vmem:[#allocation2 + $0x298] sm:$0xff]
        %v450 = vld [vmem:[#allocation2 + $0x2a0] sm:$0xff]
        %v451 = vld [vmem:[#allocation2 + $0x2a8] sm:$0xff]
        %v452 = vld [vmem:[#allocation2 + $0x2b0] sm:$0xff]
        %v453 = vld [vmem:[#allocation2 + $0x2b8] sm:$0xff]
        %v454 = vld [vmem:[#allocation2 + $0x2c0] sm:$0xff]
        %v455 = vld [vmem:[#allocation2 + $0x2c8] sm:$0xff]
        %v456 = vld [vmem:[#allocation2 + $0x2d0] sm:$0xff]
        %v457 = vld [vmem:[#allocation2 + $0x2d8] sm:$0xff]
        %v458 = vld [vmem:[#allocation2 + $0x2e0] sm:$0xff]
        %v459 = vld [vmem:[#allocation2 + $0x2e8] sm:$0xff]
        %v460 = vld [vmem:[#allocation2 + $0x2f0] sm:$0xff]
        %v461 = vld [vmem:[#allocation2 + $0x2f8] sm:$0xff]
        %v462 = vld [vmem:[#allocation2 + $0x300] sm:$0xff]
        %v463 = vld [vmem:[#allocation2 + $0x308] sm:$0xff]
        %v464 = vld [vmem:[#allocation2 + $0x310] sm:$0xff]
        %v465 = vld [vmem:[#allocation2 + $0x318] sm:$0xff]
        %v466 = vld [vmem:[#allocation2 + $0x320] sm:$0xff]
        %v467 = vld [vmem:[#allocation2 + $0x328] sm:$0xff]
        %v468 = vld [vmem:[#allocation2 + $0x330] sm:$0xff]
        %v469 = vld [vmem:[#allocation2 + $0x338] sm:$0xff]
        %v470 = vld [vmem:[#allocation2 + $0x340] sm:$0xff]
        %v471 = vld [vmem:[#allocation2 + $0x348] sm:$0xff]
        %v472 = vld [vmem:[#allocation2 + $0x350] sm:$0xff]
        %v473 = vld [vmem:[#allocation2 + $0x358] sm:$0xff]
        %v474 = vld [vmem:[#allocation2 + $0x360] sm:$0xff]
        %v475 = vld [vmem:[#allocation2 + $0x368] sm:$0xff]
        %v476 = vld [vmem:[#allocation2 + $0x370] sm:$0xff]
        %v477 = vld [vmem:[#allocation2 + $0x378] sm:$0xff]
        %v478 = vld [vmem:[#allocation2 + $0x380] sm:$0xff]
        %v479 = vld [vmem:[#allocation2 + $0x388] sm:$0xff]
        %v480 = vld [vmem:[#allocation2 + $0x390] sm:$0xff]
        %v481 = vld [vmem:[#allocation2 + $0x398] sm:$0xff]
        %v482 = vld [vmem:[#allocation2 + $0x3a0] sm:$0xff]
        %v483 = vld [vmem:[#allocation2 + $0x3a8] sm:$0xff]
        %v484 = vld [vmem:[#allocation2 + $0x3b0] sm:$0xff]
        %v485 = vld [vmem:[#allocation2 + $0x3b8] sm:$0xff]
        %v486 = vld [vmem:[#allocation2 + $0x3c0] sm:$0xff]
        %v487 = vld [vmem:[#allocation2 + $0x3c8] sm:$0xff]
        %v488 = vld [vmem:[#allocation2 + $0x3d0] sm:$0xff]
        %v489 = vld [vmem:[#allocation2 + $0x3d8] sm:$0xff]
        %v490 = vld [vmem:[#allocation2 + $0x3e0] sm:$0xff]
        %v491 = vld [vmem:[#allocation2 + $0x3e8] sm:$0xff]
        %v492 = vld [vmem:[#allocation2 + $0x3f0] sm:$0xff]
        %v493 = vld [vmem:[#allocation2 + $0x3f8] sm:$0xff]
        %v494 = vld [vmem:[#allocation2 + $0x400] sm:$0xff]
        %v495 = vld [vmem:[#allocation2 + $0x408] sm:$0xff]
        %v496 = vld [vmem:[#allocation2 + $0x410] sm:$0xff]
        %v497 = vld [vmem:[#allocation2 + $0x418] sm:$0xff]
        %v498 = vld [vmem:[#allocation2 + $0x420] sm:$0xff]
        %v499 = vld [vmem:[#allocation2 + $0x428] sm:$0xff]
        %v500 = vld [vmem:[#allocation2 + $0x430] sm:$0xff]
        %v501 = vld [vmem:[#allocation2 + $0x438] sm:$0xff]
        %v502 = vld [vmem:[#allocation2 + $0x440] sm:$0xff]
        %v503 = vld [vmem:[#allocation2 + $0x448] sm:$0xff]
        %v504 = vld [vmem:[#allocation2 + $0x450] sm:$0xff]
        %v505 = vld [vmem:[#allocation2 + $0x458] sm:$0xff]
        %v506 = vld [vmem:[#allocation2 + $0x460] sm:$0xff]
        %v507 = vld [vmem:[#allocation2 + $0x468] sm:$0xff]
        %v508 = vld [vmem:[#allocation2 + $0x470] sm:$0xff]
        %v509 = vld [vmem:[#allocation2 + $0x478] sm:$0xff]
        %v510 = vld [vmem:[#allocation2 + $0x480] sm:$0xff]
        %v511 = vld [vmem:[#allocation2 + $0x488] sm:$0xff]
        %v512 = vld [vmem:[#allocation2 + $0x490] sm:$0xff]
        %v513 = vld [vmem:[#allocation2 + $0x498] sm:$0xff]
        %v514 = vld [vmem:[#allocation2 + $0x4a0] sm:$0xff]
        %v515 = vld [vmem:[#allocation2 + $0x4a8] sm:$0xff]
        %v516 = vld [vmem:[#allocation2 + $0x4b0] sm:$0xff]
        %v517 = vld [vmem:[#allocation2 + $0x4b8] sm:$0xff]
        %v518 = vld [vmem:[#allocation2 + $0x4c0] sm:$0xff]
        %v519 = vld [vmem:[#allocation2 + $0x4c8] sm:$0xff]
        %v520 = vld [vmem:[#allocation2 + $0x4d0] sm:$0xff]
        %v521 = vld [vmem:[#allocation2 + $0x4d8] sm:$0xff]
        %v522 = vld [vmem:[#allocation2 + $0x4e0] sm:$0xff]
        %v523 = vld [vmem:[#allocation2 + $0x4e8] sm:$0xff]
        %v524 = vld [vmem:[#allocation2 + $0x4f0] sm:$0xff]
        %v525 = vld [vmem:[#allocation2 + $0x4f8] sm:$0xff]
        %v526 = vld [vmem:[#allocation2 + $0x500] sm:$0xff]
        %v527 = vld [vmem:[#allocation2 + $0x508] sm:$0xff]
        %v528 = vld [vmem:[#allocation2 + $0x510] sm:$0xff]
        %v529 = vld [vmem:[#allocation2 + $0x518] sm:$0xff]
        %v530 = vld [vmem:[#allocation2 + $0x520] sm:$0xff]
        %v531 = vld [vmem:[#allocation2 + $0x528] sm:$0xff]
        %v532 = vld [vmem:[#allocation2 + $0x530] sm:$0xff]
        %v533 = vld [vmem:[#allocation2 + $0x538] sm:$0xff]
        %v534 = vld [vmem:[#allocation2 + $0x540] sm:$0xff]
        %v535 = vld [vmem:[#allocation2 + $0x548] sm:$0xff]
        %v536 = vld [vmem:[#allocation2 + $0x550] sm:$0xff]
        %v537 = vld [vmem:[#allocation2 + $0x558] sm:$0xff]
        %v538 = vld [vmem:[#allocation2 + $0x560] sm:$0xff]
        %v539 = vld [vmem:[#allocation2 + $0x568] sm:$0xff]
        %v540 = vld [vmem:[#allocation2 + $0x570] sm:$0xff]
        %v541 = vld [vmem:[#allocation2 + $0x578] sm:$0xff]
        %v542 = vld [vmem:[#allocation2 + $0x580] sm:$0xff]
        %v543 = vld [vmem:[#allocation2 + $0x588] sm:$0xff]
        %v544 = vld [vmem:[#allocation2 + $0x590] sm:$0xff]
        %v545 = vld [vmem:[#allocation2 + $0x598] sm:$0xff]
        %v546 = vld [vmem:[#allocation2 + $0x5a0] sm:$0xff]
        %v547 = vld [vmem:[#allocation2 + $0x5a8] sm:$0xff]
        %v548 = vld [vmem:[#allocation2 + $0x5b0] sm:$0xff]
        %v549 = vld [vmem:[#allocation2 + $0x5b8] sm:$0xff]
        %v550 = vld [vmem:[#allocation2 + $0x5c0] sm:$0xff]
        %v551 = vld [vmem:[#allocation2 + $0x5c8] sm:$0xff]
        %v552 = vld [vmem:[#allocation2 + $0x5d0] sm:$0xff]
        %v553 = vld [vmem:[#allocation2 + $0x5d8] sm:$0xff]
        %v554 = vld [vmem:[#allocation2 + $0x5e0] sm:$0xff]
        %v555 = vld [vmem:[#allocation2 + $0x5e8] sm:$0xff]
        %v556 = vld [vmem:[#allocation2 + $0x5f0] sm:$0xff]
        %v557 = vld [vmem:[#allocation2 + $0x5f8] sm:$0xff]
        %v558 = vld [vmem:[#allocation2 + $0x600] sm:$0xff]
        %v559 = vld [vmem:[#allocation2 + $0x608] sm:$0xff]
        %v560 = vld [vmem:[#allocation2 + $0x610] sm:$0xff]
        %v561 = vld [vmem:[#allocation2 + $0x618] sm:$0xff]
        %v562 = vld [vmem:[#allocation2 + $0x620] sm:$0xff]
        %v563 = vld [vmem:[#allocation2 + $0x628] sm:$0xff]
        %v564 = vld [vmem:[#allocation2 + $0x630] sm:$0xff]
        %v565 = vld [vmem:[#allocation2 + $0x638] sm:$0xff]
        %v566 = vld [vmem:[#allocation2 + $0x640] sm:$0xff]
        %v567 = vld [vmem:[#allocation2 + $0x648] sm:$0xff]
        %v568 = vld [vmem:[#allocation2 + $0x650] sm:$0xff]
        %v569 = vld [vmem:[#allocation2 + $0x658] sm:$0xff]
        %v570 = vld [vmem:[#allocation2 + $0x660] sm:$0xff]
        %v571 = vld [vmem:[#allocation2 + $0x668] sm:$0xff]
        %v572 = vld [vmem:[#allocation2 + $0x670] sm:$0xff]
        %v573 = vld [vmem:[#allocation2 + $0x678] sm:$0xff]
        %v574 = vld [vmem:[#allocation2 + $0x680] sm:$0xff]
        %v575 = vld [vmem:[#allocation2 + $0x688] sm:$0xff]
        %v576 = vld [vmem:[#allocation2 + $0x690] sm:$0xff]
        %v577 = vld [vmem:[#allocation2 + $0x698] sm:$0xff]
        %v578 = vld [vmem:[#allocation2 + $0x6a0] sm:$0xff]
        %v579 = vld [vmem:[#allocation2 + $0x6a8] sm:$0xff]
        %v580 = vld [vmem:[#allocation2 + $0x6b0] sm:$0xff]
        %v581 = vld [vmem:[#allocation2 + $0x6b8] sm:$0xff]
        %v582 = vld [vmem:[#allocation2 + $0x6c0] sm:$0xff]
        %v583 = vld [vmem:[#allocation2 + $0x6c8] sm:$0xff]
        %v584 = vld [vmem:[#allocation2 + $0x6d0] sm:$0xff]
        %v585 = vld [vmem:[#allocation2 + $0x6d8] sm:$0xff]
        %v586 = vld [vmem:[#allocation2 + $0x6e0] sm:$0xff]
        %v587 = vld [vmem:[#allocation2 + $0x6e8] sm:$0xff]
        %v588 = vld [vmem:[#allocation2 + $0x6f0] sm:$0xff]
        %v589 = vld [vmem:[#allocation2 + $0x6f8] sm:$0xff]
        %v590 = vld [vmem:[#allocation2 + $0x700] sm:$0xff]
        %v591 = vld [vmem:[#allocation2 + $0x708] sm:$0xff]
        %v592 = vld [vmem:[#allocation2 + $0x710] sm:$0xff]
        %v593 = vld [vmem:[#allocation2 + $0x718] sm:$0xff]
        %v594 = vld [vmem:[#allocation2 + $0x720] sm:$0xff]
        %v595 = vld [vmem:[#allocation2 + $0x728] sm:$0xff]
        %v596 = vld [vmem:[#allocation2 + $0x730] sm:$0xff]
        %v597 = vld [vmem:[#allocation2 + $0x738] sm:$0xff]
        %v598 = vld [vmem:[#allocation2 + $0x740] sm:$0xff]
        %v599 = vld [vmem:[#allocation2 + $0x748] sm:$0xff]
        %v600 = vld [vmem:[#allocation2 + $0x750] sm:$0xff]
        %v601 = vld [vmem:[#allocation2 + $0x758] sm:$0xff]
        %v602 = vld [vmem:[#allocation2 + $0x760] sm:$0xff]
        %v603 = vld [vmem:[#allocation2 + $0x768] sm:$0xff]
        %v604 = vld [vmem:[#allocation2 + $0x770] sm:$0xff]
        %v605 = vld [vmem:[#allocation2 + $0x778] sm:$0xff]
        %v606 = vld [vmem:[#allocation2 + $0x780] sm:$0xff]
        %v607 = vld [vmem:[#allocation2 + $0x788] sm:$0xff]
        %v608 = vld [vmem:[#allocation2 + $0x790] sm:$0xff]
        %v609 = vld [vmem:[#allocation2 + $0x798] sm:$0xff]
        %v610 = vld [vmem:[#allocation2 + $0x7a0] sm:$0xff]
        %v611 = vld [vmem:[#allocation2 + $0x7a8] sm:$0xff]
        %v612 = vld [vmem:[#allocation2 + $0x7b0] sm:$0xff]
        %v613 = vld [vmem:[#allocation2 + $0x7b8] sm:$0xff]
        %v614 = vld [vmem:[#allocation2 + $0x7c0] sm:$0xff]
        %v615 = vld [vmem:[#allocation2 + $0x7c8] sm:$0xff]
        %v616 = vld [vmem:[#allocation2 + $0x7d0] sm:$0xff]
        %v617 = vld [vmem:[#allocation2 + $0x7d8] sm:$0xff]
        %v618 = vld [vmem:[#allocation2 + $0x7e0] sm:$0xff]
        %v619 = vld [vmem:[#allocation2 + $0x7e8] sm:$0xff]
        %v620 = vld [vmem:[#allocation2 + $0x7f0] sm:$0xff]
        %v621 = vld [vmem:[#allocation2 + $0x7f8] sm:$0xff]
        %v622 = vld [vmem:[#allocation2 + $0x800] sm:$0xff]
        %v623 = vld [vmem:[#allocation2 + $0x808] sm:$0xff]
        %v624 = vld [vmem:[#allocation2 + $0x810] sm:$0xff]
        %v625 = vld [vmem:[#allocation2 + $0x818] sm:$0xff]
        %v626 = vld [vmem:[#allocation2 + $0x820] sm:$0xff]
        %v627 = vld [vmem:[#allocation2 + $0x828] sm:$0xff]
        %v628 = vld [vmem:[#allocation2 + $0x830] sm:$0xff]
        %v629 = vld [vmem:[#allocation2 + $0x838] sm:$0xff]
        %v630 = vld [vmem:[#allocation2 + $0x840] sm:$0xff]
        %v631 = vld [vmem:[#allocation2 + $0x848] sm:$0xff]
        %v632 = vld [vmem:[#allocation2 + $0x850] sm:$0xff]
        %v633 = vld [vmem:[#allocation2 + $0x858] sm:$0xff]
        %v634 = vld [vmem:[#allocation2 + $0x860] sm:$0xff]
        %v635 = vld [vmem:[#allocation2 + $0x868] sm:$0xff]
        %v636 = vld [vmem:[#allocation2 + $0x870] sm:$0xff]
        %v637 = vld [vmem:[#allocation2 + $0x878] sm:$0xff]
        %v638 = vld [vmem:[#allocation2 + $0x880] sm:$0xff]
        %v639 = vld [vmem:[#allocation2 + $0x888] sm:$0xff]
        %v640 = vld [vmem:[#allocation2 + $0x890] sm:$0xff]
        %v641 = vld [vmem:[#allocation2 + $0x898] sm:$0xff]
        %v642 = vld [vmem:[#allocation2 + $0x8a0] sm:$0xff]
        %v643 = vld [vmem:[#allocation2 + $0x8a8] sm:$0xff]
        %v644 = vld [vmem:[#allocation2 + $0x8b0] sm:$0xff]
        %v645 = vld [vmem:[#allocation2 + $0x8b8] sm:$0xff]
        %v646 = vld [vmem:[#allocation2 + $0x8c0] sm:$0xff]
        %v647 = vld [vmem:[#allocation2 + $0x8c8] sm:$0xff]
        %v648 = vld [vmem:[#allocation2 + $0x8d0] sm:$0xff]
        %v649 = vld [vmem:[#allocation2 + $0x8d8] sm:$0xff]
        %v650 = vld [vmem:[#allocation2 + $0x8e0] sm:$0xff]
        %v651 = vld [vmem:[#allocation2 + $0x8e8] sm:$0xff]
        %v652 = vld [vmem:[#allocation2 + $0x8f0] sm:$0xff]
        %v653 = vld [vmem:[#allocation2 + $0x8f8] sm:$0xff]
        %v654 = vld [vmem:[#allocation2 + $0x900] sm:$0xff]
        %v655 = vld [vmem:[#allocation2 + $0x908] sm:$0xff]
        %v656 = vld [vmem:[#allocation2 + $0x910] sm:$0xff]
        %v657 = vld [vmem:[#allocation2 + $0x918] sm:$0xff]
        %v658 = vld [vmem:[#allocation2 + $0x920] sm:$0xff]
        %v659 = vld [vmem:[#allocation2 + $0x928] sm:$0xff]
        %v660 = vld [vmem:[#allocation2 + $0x930] sm:$0xff]
        %v661 = vld [vmem:[#allocation2 + $0x938] sm:$0xff]
        %v662 = vld [vmem:[#allocation2 + $0x940] sm:$0xff]
        %v663 = vld [vmem:[#allocation2 + $0x948] sm:$0xff]
        %v664 = vld [vmem:[#allocation2 + $0x950] sm:$0xff]
        %v665 = vld [vmem:[#allocation2 + $0x958] sm:$0xff]
        %v666 = vld [vmem:[#allocation2 + $0x960] sm:$0xff]
        %v667 = vld [vmem:[#allocation2 + $0x968] sm:$0xff]
        %v668 = vld [vmem:[#allocation2 + $0x970] sm:$0xff]
        %v669 = vld [vmem:[#allocation2 + $0x978] sm:$0xff]
        %v670 = vld [vmem:[#allocation2 + $0x980] sm:$0xff]
        %v671 = vld [vmem:[#allocation2 + $0x988] sm:$0xff]
        %v672 = vld [vmem:[#allocation2 + $0x990] sm:$0xff]
        %v673 = vld [vmem:[#allocation2 + $0x998] sm:$0xff]
        %v674 = vld [vmem:[#allocation2 + $0x9a0] sm:$0xff]
        %v675 = vld [vmem:[#allocation2 + $0x9a8] sm:$0xff]
        %v676 = vld [vmem:[#allocation2 + $0x9b0] sm:$0xff]
        %v677 = vld [vmem:[#allocation2 + $0x9b8] sm:$0xff]
        %v678 = vld [vmem:[#allocation2 + $0x9c0] sm:$0xff]
        %v679 = vld [vmem:[#allocation2 + $0x9c8] sm:$0xff]
        %v680 = vld [vmem:[#allocation2 + $0x9d0] sm:$0xff]
        %v681 = vld [vmem:[#allocation2 + $0x9d8] sm:$0xff]
        %v682 = vld [vmem:[#allocation2 + $0x9e0] sm:$0xff]
        %v683 = vld [vmem:[#allocation2 + $0x9e8] sm:$0xff]
        %v684 = vld [vmem:[#allocation2 + $0x9f0] sm:$0xff]
        %v685 = vld [vmem:[#allocation2 + $0x9f8] sm:$0xff]
        %v686 = vld [vmem:[#allocation2 + $0xa00] sm:$0xff]
        %v687 = vld [vmem:[#allocation2 + $0xa08] sm:$0xff]
        %v688 = vld [vmem:[#allocation2 + $0xa10] sm:$0xff]
        %v689 = vld [vmem:[#allocation2 + $0xa18] sm:$0xff]
        %v690 = vld [vmem:[#allocation2 + $0xa20] sm:$0xff]
        %v691 = vld [vmem:[#allocation2 + $0xa28] sm:$0xff]
        %v692 = vld [vmem:[#allocation2 + $0xa30] sm:$0xff]
        %v693 = vld [vmem:[#allocation2 + $0xa38] sm:$0xff]
        %v694 = vld [vmem:[#allocation2 + $0xa40] sm:$0xff]
        %v695 = vld [vmem:[#allocation2 + $0xa48] sm:$0xff]
        %v696 = vld [vmem:[#allocation2 + $0xa50] sm:$0xff]
        %v697 = vld [vmem:[#allocation2 + $0xa58] sm:$0xff]
        %v698 = vld [vmem:[#allocation2 + $0xa60] sm:$0xff]
        %v699 = vld [vmem:[#allocation2 + $0xa68] sm:$0xff]
        %v700 = vld [vmem:[#allocation2 + $0xa70] sm:$0xff]
        %v701 = vld [vmem:[#allocation2 + $0xa78] sm:$0xff]
        %v702 = vld [vmem:[#allocation2 + $0xa80] sm:$0xff]
        %v703 = vld [vmem:[#allocation2 + $0xa88] sm:$0xff]
        %v704 = vld [vmem:[#allocation2 + $0xa90] sm:$0xff]
        %v705 = vld [vmem:[#allocation2 + $0xa98] sm:$0xff]
        %v706 = vld [vmem:[#allocation2 + $0xaa0] sm:$0xff]
        %v707 = vld [vmem:[#allocation2 + $0xaa8] sm:$0xff]
        %v708 = vld [vmem:[#allocation2 + $0xab0] sm:$0xff]
        %v709 = vld [vmem:[#allocation2 + $0xab8] sm:$0xff]
        %v710 = vld [vmem:[#allocation2 + $0xac0] sm:$0xff]
        %v711 = vld [vmem:[#allocation2 + $0xac8] sm:$0xff]
        %v712 = vld [vmem:[#allocation2 + $0xad0] sm:$0xff]
        %v713 = vld [vmem:[#allocation2 + $0xad8] sm:$0xff]
        %v714 = vld [vmem:[#allocation2 + $0xae0] sm:$0xff]
        %v715 = vld [vmem:[#allocation2 + $0xae8] sm:$0xff]
        %v716 = vld [vmem:[#allocation2 + $0xaf0] sm:$0xff]
        %v717 = vld [vmem:[#allocation2 + $0xaf8] sm:$0xff]
        %v718 = vld [vmem:[#allocation2 + $0xb00] sm:$0xff]
        %v719 = vld [vmem:[#allocation2 + $0xb08] sm:$0xff]
        %v720 = vld [vmem:[#allocation2 + $0xb10] sm:$0xff]
        %v721 = vld [vmem:[#allocation2 + $0xb18] sm:$0xff]
        %v722 = vld [vmem:[#allocation2 + $0xb20] sm:$0xff]
        %v723 = vld [vmem:[#allocation2 + $0xb28] sm:$0xff]
        %v724 = vld [vmem:[#allocation2 + $0xb30] sm:$0xff]
        %v725 = vld [vmem:[#allocation2 + $0xb38] sm:$0xff]
        %v726 = vld [vmem:[#allocation2 + $0xb40] sm:$0xff]
        %v727 = vld [vmem:[#allocation2 + $0xb48] sm:$0xff]
        %v728 = vld [vmem:[#allocation2 + $0xb50] sm:$0xff]
        %v729 = vld [vmem:[#allocation2 + $0xb58] sm:$0xff]
        %v730 = vld [vmem:[#allocation2 + $0xb60] sm:$0xff]
        %v731 = vld [vmem:[#allocation2 + $0xb68] sm:$0xff]
        %v732 = vld [vmem:[#allocation2 + $0xb70] sm:$0xff]
        %v733 = vld [vmem:[#allocation2 + $0xb78] sm:$0xff]
        %v734 = vld [vmem:[#allocation2 + $0xb80] sm:$0xff]
        %v735 = vld [vmem:[#allocation2 + $0xb88] sm:$0xff]
        %v736 = vld [vmem:[#allocation2 + $0xb90] sm:$0xff]
        %v737 = vld [vmem:[#allocation2 + $0xb98] sm:$0xff]
        %v738 = vld [vmem:[#allocation2 + $0xba0] sm:$0xff]
        %v739 = vld [vmem:[#allocation2 + $0xba8] sm:$0xff]
        %v740 = vld [vmem:[#allocation2 + $0xbb0] sm:$0xff]
        %v741 = vld [vmem:[#allocation2 + $0xbb8] sm:$0xff]
        %v742 = vld [vmem:[#allocation2 + $0xbc0] sm:$0xff]
        %v743 = vld [vmem:[#allocation2 + $0xbc8] sm:$0xff]
        %v744 = vld [vmem:[#allocation2 + $0xbd0] sm:$0xff]
        %v745 = vld [vmem:[#allocation2 + $0xbd8] sm:$0xff]
        %v746 = vld [vmem:[#allocation2 + $0xbe0] sm:$0xff]
        %v747 = vld [vmem:[#allocation2 + $0xbe8] sm:$0xff]
        %v748 = vld [vmem:[#allocation2 + $0xbf0] sm:$0xff]
        %v749 = vld [vmem:[#allocation2 + $0xbf8] sm:$0xff]
        %v750 = vld [vmem:[#allocation2 + $0xc00] sm:$0xff]
        %v751 = vld [vmem:[#allocation2 + $0xc08] sm:$0xff]
        %v752 = vld [vmem:[#allocation2 + $0xc10] sm:$0xff]
        %v753 = vld [vmem:[#allocation2 + $0xc18] sm:$0xff]
        %v754 = vld [vmem:[#allocation2 + $0xc20] sm:$0xff]
        %v755 = vld [vmem:[#allocation2 + $0xc28] sm:$0xff]
        %v756 = vld [vmem:[#allocation2 + $0xc30] sm:$0xff]
        %v757 = vld [vmem:[#allocation2 + $0xc38] sm:$0xff]
        %v758 = vld [vmem:[#allocation4] sm:$0xf]
        %v760 = vlaneseq
        %v761 = vshrl.u32 %v760, 7
        %v762 = vsub.s32 0, %v761
        %v763 = vrot.slane %v758, %v762
        %v764 = vlaneseq
        %v765 = vshrl.u32 %v764, 7
        %v766 = vsub.s32 1, %v765
        %v767 = vrot.slane %v758, %v766
        %v768 = vlaneseq
        %v769 = vshrl.u32 %v768, 7
        %v770 = vsub.s32 2, %v769
        %v771 = vrot.slane %v758, %v770
        %v772 = vlaneseq
        %v773 = vshrl.u32 %v772, 7
        %v774 = vsub.s32 3, %v773
        %v775 = vrot.slane %v758, %v774
        %vm780 = vcmask 130048
        %v782 = vsel %vm780, %v365, 0
        %784 = vmatprep.subr.mxu0 %v367
        %785 = vmatpush1.msra.mxu0 %v366
        %786 = vmatprep.subr.mxu0 %v371
        %787 = vmatpush1.msra.mxu0 %v370
        %788 = vmatprep.subr.mxu0 %v375
        %789 = vmatpush1.msra.mxu0 %v374
        %790 = vmatprep.subr.mxu0 %v379
        %791 = vmatpush1.msra.mxu0 %v378
        %792 = vmatprep.subr.mxu0 %v383
        %793 = vmatpush1.msra.mxu0 %v382
        %794 = vmatprep.subr.mxu0 %v387
        %795 = vmatpush1.msra.mxu0 %v386
        %796 = vmatprep.subr.mxu0 %v391
        %797 = vmatpush1.msra.mxu0 %v390
        %798 = vmatprep.subr.mxu0 %v395
        %799 = vmatpush1.msra.mxu0 %v394
        %800 = vmatprep.subr.mxu0 %v399
        %801 = vmatpush1.msra.mxu0 %v398
        %802 = vmatprep.subr.mxu0 %v403
        %803 = vmatpush1.msra.mxu0 %v402
        %804 = vmatprep.subr.mxu0 %v407
        %805 = vmatpush1.msra.mxu0 %v406
        %806 = vmatprep.subr.mxu0 %v411
        %807 = vmatpush1.msra.mxu0 %v410
        %808 = vmatprep.subr.mxu0 %v415
        %809 = vmatpush1.msra.mxu0 %v414
        %810 = vmatprep.subr.mxu0 %v419
        %811 = vmatpush1.msra.mxu0 %v418
        %812 = vmatprep.subr.mxu0 %v423
        %813 = vmatpush1.msra.mxu0 %v422
        %814 = vmatprep.subr.mxu0 %v427
        %815 = vmatpush1.msra.mxu0 %v426
        %816 = vmatprep.subr.mxu0 %v431
        %817 = vmatpush1.msra.mxu0 %v430
        %818 = vmatprep.subr.mxu0 %v435
        %819 = vmatpush1.msra.mxu0 %v434
        %820 = vmatprep.subr.mxu0 %v439
        %821 = vmatpush1.msra.mxu0 %v438
        %822 = vmatprep.subr.mxu0 %v443
        %823 = vmatpush1.msra.mxu0 %v442
        %824 = vmatprep.subr.mxu0 %v447
        %825 = vmatpush1.msra.mxu0 %v446
        %826 = vmatprep.subr.mxu0 %v451
        %827 = vmatpush1.msra.mxu0 %v450
        %828 = vmatprep.subr.mxu0 %v455
        %829 = vmatpush1.msra.mxu0 %v454
        %830 = vmatprep.subr.mxu0 %v459
        %831 = vmatpush1.msra.mxu0 %v458
        %832 = vmatprep.subr.mxu0 %v463
        %833 = vmatpush1.msra.mxu0 %v462
        %834 = vmatprep.subr.mxu0 %v467
        %835 = vmatpush1.msra.mxu0 %v466
        %836 = vmatprep.subr.mxu0 %v471
        %837 = vmatpush1.msra.mxu0 %v470
        %838 = vmatprep.subr.mxu0 %v475
        %839 = vmatpush1.msra.mxu0 %v474
        %840 = vmatprep.subr.mxu0 %v479
        %841 = vmatpush1.msra.mxu0 %v478
        %842 = vmatprep.subr.mxu0 %v483
        %843 = vmatpush1.msra.mxu0 %v482
        %844 = vmatprep.subr.mxu0 %v487
        %845 = vmatpush1.msra.mxu0 %v486
        %846 = vmatprep.subr.mxu0 %v491
        %847 = vmatpush1.msra.mxu0 %v490
        %848 = vmatprep.mubr.f32.mxu0 %v360
        %849 = vmatmul.mubr.f32.gmra.mrb[0].mxu0 %v359
        %v850 = vpop.f32.mrb[0].mxu0
        %v851 = vadd.f32 %v763, %v850
        %v852 = vpop.f32.mrb[0].mxu0
        %v853 = vadd.f32 %v767, %v852
        %854 = vdwg.mxu0
        %855 = vmatprep.subr.mxu0 %v495
        %856 = vmatpush1.msra.mxu0 %v494
        %857 = vmatprep.subr.mxu0 %v499
        %858 = vmatpush1.msra.mxu0 %v498
        %859 = vmatprep.subr.mxu0 %v503
        %860 = vmatpush1.msra.mxu0 %v502
        %861 = vmatprep.subr.mxu0 %v507
        %862 = vmatpush1.msra.mxu0 %v506
        %863 = vmatprep.subr.mxu0 %v511
        %864 = vmatpush1.msra.mxu0 %v510
        %865 = vmatprep.subr.mxu0 %v515
        %866 = vmatpush1.msra.mxu0 %v514
        %867 = vmatprep.subr.mxu0 %v519
        %868 = vmatpush1.msra.mxu0 %v518
        %869 = vmatprep.subr.mxu0 %v523
        %870 = vmatpush1.msra.mxu0 %v522
        %871 = vmatprep.subr.mxu0 %v527
        %872 = vmatpush1.msra.mxu0 %v526
        %873 = vmatprep.subr.mxu0 %v531
        %874 = vmatpush1.msra.mxu0 %v530
        %875 = vmatprep.subr.mxu0 %v535
        %876 = vmatpush1.msra.mxu0 %v534
        %877 = vmatprep.subr.mxu0 %v539
        %878 = vmatpush1.msra.mxu0 %v538
        %879 = vmatprep.subr.mxu0 %v543
        %880 = vmatpush1.msra.mxu0 %v542
        %881 = vmatprep.subr.mxu0 %v547
        %882 = vmatpush1.msra.mxu0 %v546
        %883 = vmatprep.subr.mxu0 %v551
        %884 = vmatpush1.msra.mxu0 %v550
        %885 = vmatprep.subr.mxu0 %v555
        %886 = vmatpush1.msra.mxu0 %v554
        %887 = vmatprep.subr.mxu0 %v559
        %888 = vmatpush1.msra.mxu0 %v558
        %889 = vmatprep.subr.mxu0 %v563
        %890 = vmatpush1.msra.mxu0 %v562
        %891 = vmatprep.subr.mxu0 %v567
        %892 = vmatpush1.msra.mxu0 %v566
        %893 = vmatprep.subr.mxu0 %v571
        %894 = vmatpush1.msra.mxu0 %v570
        %895 = vmatprep.subr.mxu0 %v575
        %896 = vmatpush1.msra.mxu0 %v574
        %897 = vmatprep.subr.mxu0 %v579
        %898 = vmatpush1.msra.mxu0 %v578
        %899 = vmatprep.subr.mxu0 %v583
        %900 = vmatpush1.msra.mxu0 %v582
        %901 = vmatprep.subr.mxu0 %v587
        %902 = vmatpush1.msra.mxu0 %v586
        %903 = vmatprep.subr.mxu0 %v591
        %904 = vmatpush1.msra.mxu0 %v590
        %905 = vmatprep.subr.mxu0 %v595
        %906 = vmatpush1.msra.mxu0 %v594
        %907 = vmatprep.subr.mxu0 %v599
        %908 = vmatpush1.msra.mxu0 %v598
        %909 = vmatprep.subr.mxu0 %v603
        %910 = vmatpush1.msra.mxu0 %v602
        %911 = vmatprep.subr.mxu0 %v607
        %912 = vmatpush1.msra.mxu0 %v606
        %913 = vmatprep.subr.mxu0 %v611
        %914 = vmatpush1.msra.mxu0 %v610
        %915 = vmatprep.subr.mxu0 %v615
        %916 = vmatpush1.msra.mxu0 %v614
        %917 = vmatprep.subr.mxu0 %v619
        %918 = vmatpush1.msra.mxu0 %v618
        %919 = vmatprep.mubr.f32.mxu0 %v362
        %920 = vmatmul.mubr.f32.gmra.mrb[0].mxu0 %v361
        %v921 = vpop.f32.mrb[0].mxu0
        %v922 = vadd.f32 %v851, %v921
        %v923 = vpop.f32.mrb[0].mxu0
        %v924 = vadd.f32 %v853, %v923
        %925 = vdwg.mxu0
        %926 = vmatprep.subr.mxu0 %v623
        %927 = vmatpush1.msra.mxu0 %v622
        %928 = vmatprep.subr.mxu0 %v627
        %929 = vmatpush1.msra.mxu0 %v626
        %930 = vmatprep.subr.mxu0 %v631
        %931 = vmatpush1.msra.mxu0 %v630
        %932 = vmatprep.subr.mxu0 %v635
        %933 = vmatpush1.msra.mxu0 %v634
        %934 = vmatprep.subr.mxu0 %v639
        %935 = vmatpush1.msra.mxu0 %v638
        %936 = vmatprep.subr.mxu0 %v643
        %937 = vmatpush1.msra.mxu0 %v642
        %938 = vmatprep.subr.mxu0 %v647
        %939 = vmatpush1.msra.mxu0 %v646
        %940 = vmatprep.subr.mxu0 %v651
        %941 = vmatpush1.msra.mxu0 %v650
        %942 = vmatprep.subr.mxu0 %v655
        %943 = vmatpush1.msra.mxu0 %v654
        %944 = vmatprep.subr.mxu0 %v659
        %945 = vmatpush1.msra.mxu0 %v658
        %946 = vmatprep.subr.mxu0 %v663
        %947 = vmatpush1.msra.mxu0 %v662
        %948 = vmatprep.subr.mxu0 %v667
        %949 = vmatpush1.msra.mxu0 %v666
        %950 = vmatprep.subr.mxu0 %v671
        %951 = vmatpush1.msra.mxu0 %v670
        %952 = vmatprep.subr.mxu0 %v675
        %953 = vmatpush1.msra.mxu0 %v674
        %954 = vmatprep.subr.mxu0 %v679
        %955 = vmatpush1.msra.mxu0 %v678
        %956 = vmatprep.subr.mxu0 %v683
        %957 = vmatpush1.msra.mxu0 %v682
        %958 = vmatprep.subr.mxu0 %v687
        %959 = vmatpush1.msra.mxu0 %v686
        %960 = vmatprep.subr.mxu0 %v691
        %961 = vmatpush1.msra.mxu0 %v690
        %962 = vmatprep.subr.mxu0 %v695
        %963 = vmatpush1.msra.mxu0 %v694
        %964 = vmatprep.subr.mxu0 %v699
        %965 = vmatpush1.msra.mxu0 %v698
        %966 = vmatprep.subr.mxu0 %v703
        %967 = vmatpush1.msra.mxu0 %v702
        %968 = vmatprep.subr.mxu0 %v707
        %969 = vmatpush1.msra.mxu0 %v706
        %970 = vmatprep.subr.mxu0 %v711
        %971 = vmatpush1.msra.mxu0 %v710
        %972 = vmatprep.subr.mxu0 %v715
        %973 = vmatpush1.msra.mxu0 %v714
        %974 = vmatprep.subr.mxu0 %v719
        %975 = vmatpush1.msra.mxu0 %v718
        %976 = vmatprep.subr.mxu0 %v723
        %977 = vmatpush1.msra.mxu0 %v722
        %978 = vmatprep.subr.mxu0 %v727
        %979 = vmatpush1.msra.mxu0 %v726
        %980 = vmatprep.subr.mxu0 %v731
        %981 = vmatpush1.msra.mxu0 %v730
        %982 = vmatprep.subr.mxu0 %v735
        %983 = vmatpush1.msra.mxu0 %v734
        %984 = vmatprep.subr.mxu0 %v739
        %985 = vmatpush1.msra.mxu0 %v738
        %986 = vmatprep.subr.mxu0 %v743
        %987 = vmatpush1.msra.mxu0 %v742
        %988 = vmatprep.subr.mxu0 %v747
        %989 = vmatpush1.msra.mxu0 %v746
        %990 = vmatprep.mubr.f32.mxu0 %v364
        %991 = vmatmul.mubr.f32.gmra.mrb[0].mxu0 %v363
        %v992 = vpop.f32.mrb[0].mxu0
        %v993 = vadd.f32 %v922, %v992
        %v994 = vpop.f32.mrb[0].mxu0
        %v995 = vadd.f32 %v924, %v994
        %996 = vdwg.mxu0
        %997 = vmatprep.subr.mxu0 %v751
        %998 = vmatpush1.msra.mxu0 %v750
        %999 = vmatprep.subr.mxu0 %v755
        %1000 = vmatpush1.msra.mxu0 %v754
        %1001 = vmatprep.subr.mxu0 0.0
        %1002 = vmatpush1.msra.mxu0 0.0
        %1003 = vmatprep.subr.mxu0 0.0
        %1004 = vmatpush1.msra.mxu0 0.0
        %1005 = vmatprep.subr.mxu0 0.0
        %1006 = vmatpush1.msra.mxu0 0.0
        %1007 = vmatprep.subr.mxu0 0.0
        %1008 = vmatpush1.msra.mxu0 0.0
        %1009 = vmatprep.subr.mxu0 0.0
        %1010 = vmatpush1.msra.mxu0 0.0
        %1011 = vmatprep.subr.mxu0 0.0
        %1012 = vmatpush1.msra.mxu0 0.0
        %1013 = vmatprep.subr.mxu0 0.0
        %1014 = vmatpush1.msra.mxu0 0.0
        %1015 = vmatprep.subr.mxu0 0.0
        %1016 = vmatpush1.msra.mxu0 0.0
        %1017 = vmatprep.subr.mxu0 0.0
        %1018 = vmatpush1.msra.mxu0 0.0
        %1019 = vmatprep.subr.mxu0 0.0
        %1020 = vmatpush1.msra.mxu0 0.0
        %1021 = vmatprep.subr.mxu0 0.0
        %1022 = vmatpush1.msra.mxu0 0.0
        %1023 = vmatprep.subr.mxu0 0.0
        %1024 = vmatpush1.msra.mxu0 0.0
        %1025 = vmatprep.subr.mxu0 0.0
        %1026 = vmatpush1.msra.mxu0 0.0
        %1027 = vmatprep.subr.mxu0 0.0
        %1028 = vmatpush1.msra.mxu0 0.0
        %1029 = vmatprep.subr.mxu0 0.0
        %1030 = vmatpush1.msra.mxu0 0.0
        %1031 = vmatprep.subr.mxu0 0.0
        %1032 = vmatpush1.msra.mxu0 0.0
        %1033 = vmatprep.subr.mxu0 0.0
        %1034 = vmatpush1.msra.mxu0 0.0
        %1035 = vmatprep.subr.mxu0 0.0
        %1036 = vmatpush1.msra.mxu0 0.0
        %1037 = vmatprep.subr.mxu0 0.0
        %1038 = vmatpush1.msra.mxu0 0.0
        %1039 = vmatprep.subr.mxu0 0.0
        %1040 = vmatpush1.msra.mxu0 0.0
        %1041 = vmatprep.subr.mxu0 0.0
        %1042 = vmatpush1.msra.mxu0 0.0
        %1043 = vmatprep.subr.mxu0 0.0
        %1044 = vmatpush1.msra.mxu0 0.0
        %1045 = vmatprep.subr.mxu0 0.0
        %1046 = vmatpush1.msra.mxu0 0.0
        %1047 = vmatprep.subr.mxu0 0.0
        %1048 = vmatpush1.msra.mxu0 0.0
        %1049 = vmatprep.subr.mxu0 0.0
        %1050 = vmatpush1.msra.mxu0 0.0
        %1051 = vmatprep.subr.mxu0 0.0
        %1052 = vmatpush1.msra.mxu0 0.0
        %1053 = vmatprep.subr.mxu0 0.0
        %1054 = vmatpush1.msra.mxu0 0.0
        %1055 = vmatprep.subr.mxu0 0.0
        %1056 = vmatpush1.msra.mxu0 0.0
        %1057 = vmatprep.subr.mxu0 0.0
        %1058 = vmatpush1.msra.mxu0 0.0
        %1059 = vmatprep.subr.mxu0 0.0
        %1060 = vmatpush1.msra.mxu0 0.0
        %1061 = vmatprep.mubr.f32.mxu0 0.0
        %1062 = vmatmul.mubr.f32.gmra.mrb[0].mxu0 %v782
        %v1063 = vpop.f32.mrb[0].mxu0
        %v1064 = vadd.f32 %v993, %v1063
        %v1065 = vpop.f32.mrb[0].mxu0
        %v1066 = vadd.f32 %v995, %v1065
        %1067 = vdwg.mxu0
        %1068 = vmatprep.subr.mxu0 %v369
        %1069 = vmatpush1.msra.mxu0 %v368
        %1070 = vmatprep.subr.mxu0 %v373
        %1071 = vmatpush1.msra.mxu0 %v372
        %1072 = vmatprep.subr.mxu0 %v377
        %1073 = vmatpush1.msra.mxu0 %v376
        %1074 = vmatprep.subr.mxu0 %v381
        %1075 = vmatpush1.msra.mxu0 %v380
        %1076 = vmatprep.subr.mxu0 %v385
        %1077 = vmatpush1.msra.mxu0 %v384
        %1078 = vmatprep.subr.mxu0 %v389
        %1079 = vmatpush1.msra.mxu0 %v388
        %1080 = vmatprep.subr.mxu0 %v393
        %1081 = vmatpush1.msra.mxu0 %v392
        %1082 = vmatprep.subr.mxu0 %v397
        %1083 = vmatpush1.msra.mxu0 %v396
        %1084 = vmatprep.subr.mxu0 %v401
        %1085 = vmatpush1.msra.mxu0 %v400
        %1086 = vmatprep.subr.mxu0 %v405
        %1087 = vmatpush1.msra.mxu0 %v404
        %1088 = vmatprep.subr.mxu0 %v409
        %1089 = vmatpush1.msra.mxu0 %v408
        %1090 = vmatprep.subr.mxu0 %v413
        %1091 = vmatpush1.msra.mxu0 %v412
        %1092 = vmatprep.subr.mxu0 %v417
        %1093 = vmatpush1.msra.mxu0 %v416
        %1094 = vmatprep.subr.mxu0 %v421
        %1095 = vmatpush1.msra.mxu0 %v420
        %1096 = vmatprep.subr.mxu0 %v425
        %1097 = vmatpush1.msra.mxu0 %v424
        %1098 = vmatprep.subr.mxu0 %v429
        %1099 = vmatpush1.msra.mxu0 %v428
        %1100 = vmatprep.subr.mxu0 %v433
        %1101 = vmatpush1.msra.mxu0 %v432
        %1102 = vmatprep.subr.mxu0 %v437
        %1103 = vmatpush1.msra.mxu0 %v436
        %1104 = vmatprep.subr.mxu0 %v441
        %1105 = vmatpush1.msra.mxu0 %v440
        %1106 = vmatprep.subr.mxu0 %v445
        %1107 = vmatpush1.msra.mxu0 %v444
        %1108 = vmatprep.subr.mxu0 %v449
        %1109 = vmatpush1.msra.mxu0 %v448
        %1110 = vmatprep.subr.mxu0 %v453
        %1111 = vmatpush1.msra.mxu0 %v452
        %1112 = vmatprep.subr.mxu0 %v457
        %1113 = vmatpush1.msra.mxu0 %v456
        %1114 = vmatprep.subr.mxu0 %v461
        %1115 = vmatpush1.msra.mxu0 %v460
        %1116 = vmatprep.subr.mxu0 %v465
        %1117 = vmatpush1.msra.mxu0 %v464
        %1118 = vmatprep.subr.mxu0 %v469
        %1119 = vmatpush1.msra.mxu0 %v468
        %1120 = vmatprep.subr.mxu0 %v473
        %1121 = vmatpush1.msra.mxu0 %v472
        %1122 = vmatprep.subr.mxu0 %v477
        %1123 = vmatpush1.msra.mxu0 %v476
        %1124 = vmatprep.subr.mxu0 %v481
        %1125 = vmatpush1.msra.mxu0 %v480
        %1126 = vmatprep.subr.mxu0 %v485
        %1127 = vmatpush1.msra.mxu0 %v484
        %1128 = vmatprep.subr.mxu0 %v489
        %1129 = vmatpush1.msra.mxu0 %v488
        %1130 = vmatprep.subr.mxu0 %v493
        %1131 = vmatpush1.msra.mxu0 %v492
        %1132 = vmatprep.mubr.f32.mxu0 %v360
        %1133 = vmatmul.mubr.f32.gmra.mrb[0].mxu0 %v359
        %v1134 = vpop.f32.mrb[0].mxu0
        %v1135 = vadd.f32 %v771, %v1134
        %v1136 = vpop.f32.mrb[0].mxu0
        %v1137 = vadd.f32 %v775, %v1136
        %1138 = vdwg.mxu0
        %1139 = vmatprep.subr.mxu0 %v497
        %1140 = vmatpush1.msra.mxu0 %v496
        %1141 = vmatprep.subr.mxu0 %v501
        %1142 = vmatpush1.msra.mxu0 %v500
        %1143 = vmatprep.subr.mxu0 %v505
        %1144 = vmatpush1.msra.mxu0 %v504
        %1145 = vmatprep.subr.mxu0 %v509
        %1146 = vmatpush1.msra.mxu0 %v508
        %1147 = vmatprep.subr.mxu0 %v513
        %1148 = vmatpush1.msra.mxu0 %v512
        %1149 = vmatprep.subr.mxu0 %v517
        %1150 = vmatpush1.msra.mxu0 %v516
        %1151 = vmatprep.subr.mxu0 %v521
        %1152 = vmatpush1.msra.mxu0 %v520
        %1153 = vmatprep.subr.mxu0 %v525
        %1154 = vmatpush1.msra.mxu0 %v524
        %1155 = vmatprep.subr.mxu0 %v529
        %1156 = vmatpush1.msra.mxu0 %v528
        %1157 = vmatprep.subr.mxu0 %v533
        %1158 = vmatpush1.msra.mxu0 %v532
        %1159 = vmatprep.subr.mxu0 %v537
        %1160 = vmatpush1.msra.mxu0 %v536
        %1161 = vmatprep.subr.mxu0 %v541
        %1162 = vmatpush1.msra.mxu0 %v540
        %1163 = vmatprep.subr.mxu0 %v545
        %1164 = vmatpush1.msra.mxu0 %v544
        %1165 = vmatprep.subr.mxu0 %v549
        %1166 = vmatpush1.msra.mxu0 %v548
        %1167 = vmatprep.subr.mxu0 %v553
        %1168 = vmatpush1.msra.mxu0 %v552
        %1169 = vmatprep.subr.mxu0 %v557
        %1170 = vmatpush1.msra.mxu0 %v556
        %1171 = vmatprep.subr.mxu0 %v561
        %1172 = vmatpush1.msra.mxu0 %v560
        %1173 = vmatprep.subr.mxu0 %v565
        %1174 = vmatpush1.msra.mxu0 %v564
        %1175 = vmatprep.subr.mxu0 %v569
        %1176 = vmatpush1.msra.mxu0 %v568
        %1177 = vmatprep.subr.mxu0 %v573
        %1178 = vmatpush1.msra.mxu0 %v572
        %1179 = vmatprep.subr.mxu0 %v577
        %1180 = vmatpush1.msra.mxu0 %v576
        %1181 = vmatprep.subr.mxu0 %v581
        %1182 = vmatpush1.msra.mxu0 %v580
        %1183 = vmatprep.subr.mxu0 %v585
        %1184 = vmatpush1.msra.mxu0 %v584
        %1185 = vmatprep.subr.mxu0 %v589
        %1186 = vmatpush1.msra.mxu0 %v588
        %1187 = vmatprep.subr.mxu0 %v593
        %1188 = vmatpush1.msra.mxu0 %v592
        %1189 = vmatprep.subr.mxu0 %v597
        %1190 = vmatpush1.msra.mxu0 %v596
        %1191 = vmatprep.subr.mxu0 %v601
        %1192 = vmatpush1.msra.mxu0 %v600
        %1193 = vmatprep.subr.mxu0 %v605
        %1194 = vmatpush1.msra.mxu0 %v604
        %1195 = vmatprep.subr.mxu0 %v609
        %1196 = vmatpush1.msra.mxu0 %v608
        %1197 = vmatprep.subr.mxu0 %v613
        %1198 = vmatpush1.msra.mxu0 %v612
        %1199 = vmatprep.subr.mxu0 %v617
        %1200 = vmatpush1.msra.mxu0 %v616
        %1201 = vmatprep.subr.mxu0 %v621
        %1202 = vmatpush1.msra.mxu0 %v620
        %1203 = vmatprep.mubr.f32.mxu0 %v362
        %1204 = vmatmul.mubr.f32.gmra.mrb[0].mxu0 %v361
        %v1205 = vpop.f32.mrb[0].mxu0
        %v1206 = vadd.f32 %v1135, %v1205
        %v1207 = vpop.f32.mrb[0].mxu0
        %v1208 = vadd.f32 %v1137, %v1207
        %1209 = vdwg.mxu0
        %1210 = vmatprep.subr.mxu0 %v625
        %1211 = vmatpush1.msra.mxu0 %v624
        %1212 = vmatprep.subr.mxu0 %v629
        %1213 = vmatpush1.msra.mxu0 %v628
        %1214 = vmatprep.subr.mxu0 %v633
        %1215 = vmatpush1.msra.mxu0 %v632
        %1216 = vmatprep.subr.mxu0 %v637
        %1217 = vmatpush1.msra.mxu0 %v636
        %1218 = vmatprep.subr.mxu0 %v641
        %1219 = vmatpush1.msra.mxu0 %v640
        %1220 = vmatprep.subr.mxu0 %v645
        %1221 = vmatpush1.msra.mxu0 %v644
        %1222 = vmatprep.subr.mxu0 %v649
        %1223 = vmatpush1.msra.mxu0 %v648
        %1224 = vmatprep.subr.mxu0 %v653
        %1225 = vmatpush1.msra.mxu0 %v652
        %1226 = vmatprep.subr.mxu0 %v657
        %1227 = vmatpush1.msra.mxu0 %v656
        %1228 = vmatprep.subr.mxu0 %v661
        %1229 = vmatpush1.msra.mxu0 %v660
        %1230 = vmatprep.subr.mxu0 %v665
        %1231 = vmatpush1.msra.mxu0 %v664
        %1232 = vmatprep.subr.mxu0 %v669
        %1233 = vmatpush1.msra.mxu0 %v668
        %1234 = vmatprep.subr.mxu0 %v673
        %1235 = vmatpush1.msra.mxu0 %v672
        %1236 = vmatprep.subr.mxu0 %v677
        %1237 = vmatpush1.msra.mxu0 %v676
        %1238 = vmatprep.subr.mxu0 %v681
        %1239 = vmatpush1.msra.mxu0 %v680
        %1240 = vmatprep.subr.mxu0 %v685
        %1241 = vmatpush1.msra.mxu0 %v684
        %1242 = vmatprep.subr.mxu0 %v689
        %1243 = vmatpush1.msra.mxu0 %v688
        %1244 = vmatprep.subr.mxu0 %v693
        %1245 = vmatpush1.msra.mxu0 %v692
        %1246 = vmatprep.subr.mxu0 %v697
        %1247 = vmatpush1.msra.mxu0 %v696
        %1248 = vmatprep.subr.mxu0 %v701
        %1249 = vmatpush1.msra.mxu0 %v700
        %1250 = vmatprep.subr.mxu0 %v705
        %1251 = vmatpush1.msra.mxu0 %v704
        %1252 = vmatprep.subr.mxu0 %v709
        %1253 = vmatpush1.msra.mxu0 %v708
        %1254 = vmatprep.subr.mxu0 %v713
        %1255 = vmatpush1.msra.mxu0 %v712
        %1256 = vmatprep.subr.mxu0 %v717
        %1257 = vmatpush1.msra.mxu0 %v716
        %1258 = vmatprep.subr.mxu0 %v721
        %1259 = vmatpush1.msra.mxu0 %v720
        %1260 = vmatprep.subr.mxu0 %v725
        %1261 = vmatpush1.msra.mxu0 %v724
        %1262 = vmatprep.subr.mxu0 %v729
        %1263 = vmatpush1.msra.mxu0 %v728
        %1264 = vmatprep.subr.mxu0 %v733
        %1265 = vmatpush1.msra.mxu0 %v732
        %1266 = vmatprep.subr.mxu0 %v737
        %1267 = vmatpush1.msra.mxu0 %v736
        %1268 = vmatprep.subr.mxu0 %v741
        %1269 = vmatpush1.msra.mxu0 %v740
        %1270 = vmatprep.subr.mxu0 %v745
        %1271 = vmatpush1.msra.mxu0 %v744
        %1272 = vmatprep.subr.mxu0 %v749
        %1273 = vmatpush1.msra.mxu0 %v748
        %1274 = vmatprep.mubr.f32.mxu0 %v364
        %1275 = vmatmul.mubr.f32.gmra.mrb[0].mxu0 %v363
        %v1276 = vpop.f32.mrb[0].mxu0
        %v1277 = vadd.f32 %v1206, %v1276
        %v1278 = vpop.f32.mrb[0].mxu0
        %v1279 = vadd.f32 %v1208, %v1278
        %1280 = vdwg.mxu0
        %1281 = vmatprep.subr.mxu0 %v753
        %1282 = vmatpush1.msra.mxu0 %v752
        %1283 = vmatprep.subr.mxu0 %v757
        %1284 = vmatpush1.msra.mxu0 %v756
        %1285 = vmatprep.subr.mxu0 0.0
        %1286 = vmatpush1.msra.mxu0 0.0
        %1287 = vmatprep.subr.mxu0 0.0
        %1288 = vmatpush1.msra.mxu0 0.0
        %1289 = vmatprep.subr.mxu0 0.0
        %1290 = vmatpush1.msra.mxu0 0.0
        %1291 = vmatprep.subr.mxu0 0.0
        %1292 = vmatpush1.msra.mxu0 0.0
        %1293 = vmatprep.subr.mxu0 0.0
        %1294 = vmatpush1.msra.mxu0 0.0
        %1295 = vmatprep.subr.mxu0 0.0
        %1296 = vmatpush1.msra.mxu0 0.0
        %1297 = vmatprep.subr.mxu0 0.0
        %1298 = vmatpush1.msra.mxu0 0.0
        %1299 = vmatprep.subr.mxu0 0.0
        %1300 = vmatpush1.msra.mxu0 0.0
        %1301 = vmatprep.subr.mxu0 0.0
        %1302 = vmatpush1.msra.mxu0 0.0
        %1303 = vmatprep.subr.mxu0 0.0
        %1304 = vmatpush1.msra.mxu0 0.0
        %1305 = vmatprep.subr.mxu0 0.0
        %1306 = vmatpush1.msra.mxu0 0.0
        %1307 = vmatprep.subr.mxu0 0.0
        %1308 = vmatpush1.msra.mxu0 0.0
        %1309 = vmatprep.subr.mxu0 0.0
        %1310 = vmatpush1.msra.mxu0 0.0
        %1311 = vmatprep.subr.mxu0 0.0
        %1312 = vmatpush1.msra.mxu0 0.0
        %1313 = vmatprep.subr.mxu0 0.0
        %1314 = vmatpush1.msra.mxu0 0.0
        %1315 = vmatprep.subr.mxu0 0.0
        %1316 = vmatpush1.msra.mxu0 0.0
        %1317 = vmatprep.subr.mxu0 0.0
        %1318 = vmatpush1.msra.mxu0 0.0
        %1319 = vmatprep.subr.mxu0 0.0
        %1320 = vmatpush1.msra.mxu0 0.0
        %1321 = vmatprep.subr.mxu0 0.0
        %1322 = vmatpush1.msra.mxu0 0.0
        %1323 = vmatprep.subr.mxu0 0.0
        %1324 = vmatpush1.msra.mxu0 0.0
        %1325 = vmatprep.subr.mxu0 0.0
        %1326 = vmatpush1.msra.mxu0 0.0
        %1327 = vmatprep.subr.mxu0 0.0
        %1328 = vmatpush1.msra.mxu0 0.0
        %1329 = vmatprep.subr.mxu0 0.0
        %1330 = vmatpush1.msra.mxu0 0.0
        %1331 = vmatprep.subr.mxu0 0.0
        %1332 = vmatpush1.msra.mxu0 0.0
        %1333 = vmatprep.subr.mxu0 0.0
        %1334 = vmatpush1.msra.mxu0 0.0
        %1335 = vmatprep.subr.mxu0 0.0
        %1336 = vmatpush1.msra.mxu0 0.0
        %1337 = vmatprep.subr.mxu0 0.0
        %1338 = vmatpush1.msra.mxu0 0.0
        %1339 = vmatprep.subr.mxu0 0.0
        %1340 = vmatpush1.msra.mxu0 0.0
        %1341 = vmatprep.subr.mxu0 0.0
        %1342 = vmatpush1.msra.mxu0 0.0
        %1343 = vmatprep.subr.mxu0 0.0
        %1344 = vmatpush1.msra.mxu0 0.0
        %1345 = vmatprep.mubr.f32.mxu0 0.0
        %1346 = vmatmul.mubr.f32.gmra.mrb[0].mxu0 %v782
        %v1347 = vpop.f32.mrb[0].mxu0
        %v1348 = vadd.f32 %v1277, %v1347
        %v1349 = vpop.f32.mrb[0].mxu0
        %v1350 = vadd.f32 %v1279, %v1349
        %1351 = vdwg.mxu0
        %v1352 = vmax.f32 %v1064, 0.0
        %v1353 = vmax.f32 %v1066, 0.0
        %v1354 = vmax.f32 %v1348, 0.0
        %v1355 = vmax.f32 %v1350, 0.0
        %v1356 = vld [vmem:[#allocation6] sm:$0xff]
        %v1357 = vld [vmem:[#allocation6 + $0x8] sm:$0xff]
        %v1358 = vld [vmem:[#allocation6 + $0x10] sm:$0xff]
        %v1359 = vld [vmem:[#allocation6 + $0x18] sm:$0xff]
        %v1360 = vld [vmem:[#allocation6 + $0x20] sm:$0xff]
        %v1361 = vld [vmem:[#allocation6 + $0x28] sm:$0xff]
        %v1362 = vld [vmem:[#allocation6 + $0x30] sm:$0xff]
        %v1363 = vld [vmem:[#allocation6 + $0x38] sm:$0xff]
        %v1364 = vld [vmem:[#allocation6 + $0x40] sm:$0xff]
        %v1365 = vld [vmem:[#allocation6 + $0x48] sm:$0xff]
        %v1366 = vld [vmem:[#allocation6 + $0x50] sm:$0xff]
        %v1367 = vld [vmem:[#allocation6 + $0x58] sm:$0xff]
        %v1368 = vld [vmem:[#allocation6 + $0x60] sm:$0xff]
        %v1369 = vld [vmem:[#allocation6 + $0x68] sm:$0xff]
        %v1370 = vld [vmem:[#allocation6 + $0x70] sm:$0xff]
        %v1371 = vld [vmem:[#allocation6 + $0x78] sm:$0xff]
        %v1372 = vld [vmem:[#allocation6 + $0x80] sm:$0xff]
        %v1373 = vld [vmem:[#allocation6 + $0x88] sm:$0xff]
        %v1374 = vld [vmem:[#allocation6 + $0x90] sm:$0xff]
        %v1375 = vld [vmem:[#allocation6 + $0x98] sm:$0xff]
        %v1376 = vld [vmem:[#allocation6 + $0xa0] sm:$0xff]
        %v1377 = vld [vmem:[#allocation6 + $0xa8] sm:$0xff]
        %v1378 = vld [vmem:[#allocation6 + $0xb0] sm:$0xff]
        %v1379 = vld [vmem:[#allocation6 + $0xb8] sm:$0xff]
        %v1380 = vld [vmem:[#allocation6 + $0xc0] sm:$0xff]
        %v1381 = vld [vmem:[#allocation6 + $0xc8] sm:$0xff]
        %v1382 = vld [vmem:[#allocation6 + $0xd0] sm:$0xff]
        %v1383 = vld [vmem:[#allocation6 + $0xd8] sm:$0xff]
        %v1384 = vld [vmem:[#allocation6 + $0xe0] sm:$0xff]
        %v1385 = vld [vmem:[#allocation6 + $0xe8] sm:$0xff]
        %v1386 = vld [vmem:[#allocation6 + $0xf0] sm:$0xff]
        %v1387 = vld [vmem:[#allocation6 + $0xf8] sm:$0xff]
        %v1388 = vld [vmem:[#allocation6 + $0x100] sm:$0xff]
        %v1389 = vld [vmem:[#allocation6 + $0x108] sm:$0xff]
        %v1390 = vld [vmem:[#allocation6 + $0x110] sm:$0xff]
        %v1391 = vld [vmem:[#allocation6 + $0x118] sm:$0xff]
        %v1392 = vld [vmem:[#allocation6 + $0x120] sm:$0xff]
        %v1393 = vld [vmem:[#allocation6 + $0x128] sm:$0xff]
        %v1394 = vld [vmem:[#allocation6 + $0x130] sm:$0xff]
        %v1395 = vld [vmem:[#allocation6 + $0x138] sm:$0xff]
        %v1396 = vld [vmem:[#allocation6 + $0x140] sm:$0xff]
        %v1397 = vld [vmem:[#allocation6 + $0x148] sm:$0xff]
        %v1398 = vld [vmem:[#allocation6 + $0x150] sm:$0xff]
        %v1399 = vld [vmem:[#allocation6 + $0x158] sm:$0xff]
        %v1400 = vld [vmem:[#allocation6 + $0x160] sm:$0xff]
        %v1401 = vld [vmem:[#allocation6 + $0x168] sm:$0xff]
        %v1402 = vld [vmem:[#allocation6 + $0x170] sm:$0xff]
        %v1403 = vld [vmem:[#allocation6 + $0x178] sm:$0xff]
        %v1404 = vld [vmem:[#allocation6 + $0x180] sm:$0xff]
        %v1405 = vld [vmem:[#allocation6 + $0x188] sm:$0xff]
        %v1406 = vld [vmem:[#allocation6 + $0x190] sm:$0xff]
        %v1407 = vld [vmem:[#allocation6 + $0x198] sm:$0xff]
        %v1408 = vld [vmem:[#allocation6 + $0x1a0] sm:$0xff]
        %v1409 = vld [vmem:[#allocation6 + $0x1a8] sm:$0xff]
        %v1410 = vld [vmem:[#allocation6 + $0x1b0] sm:$0xff]
        %v1411 = vld [vmem:[#allocation6 + $0x1b8] sm:$0xff]
        %v1412 = vld [vmem:[#allocation6 + $0x1c0] sm:$0xff]
        %v1413 = vld [vmem:[#allocation6 + $0x1c8] sm:$0xff]
        %v1414 = vld [vmem:[#allocation6 + $0x1d0] sm:$0xff]
        %v1415 = vld [vmem:[#allocation6 + $0x1d8] sm:$0xff]
        %v1416 = vld [vmem:[#allocation6 + $0x1e0] sm:$0xff]
        %v1417 = vld [vmem:[#allocation6 + $0x1e8] sm:$0xff]
        %v1418 = vld [vmem:[#allocation6 + $0x1f0] sm:$0xff]
        %v1419 = vld [vmem:[#allocation6 + $0x1f8] sm:$0xff]
        %v1420 = vld [vmem:[#allocation7] sm:$0x1]
        %v1422 = vlaneseq
        %v1423 = vshrl.u32 %v1422, 7
        %v1424 = vsub.s32 0, %v1423
        %v1425 = vrot.slane %v1420, %v1424
        %1427 = vmatprep.subr.mxu0 0.0
        %1428 = vmatpush1.msra.mxu0 %v1356
        %1429 = vmatprep.subr.mxu0 0.0
        %1430 = vmatpush1.msra.mxu0 %v1357
        %1431 = vmatprep.subr.mxu0 0.0
        %1432 = vmatpush1.msra.mxu0 %v1358
        %1433 = vmatprep.subr.mxu0 0.0
        %1434 = vmatpush1.msra.mxu0 %v1359
        %1435 = vmatprep.subr.mxu0 0.0
        %1436 = vmatpush1.msra.mxu0 %v1360
        %1437 = vmatprep.subr.mxu0 0.0
        %1438 = vmatpush1.msra.mxu0 %v1361
        %1439 = vmatprep.subr.mxu0 0.0
        %1440 = vmatpush1.msra.mxu0 %v1362
        %1441 = vmatprep.subr.mxu0 0.0
        %1442 = vmatpush1.msra.mxu0 %v1363
        %1443 = vmatprep.subr.mxu0 0.0
        %1444 = vmatpush1.msra.mxu0 %v1364
        %1445 = vmatprep.subr.mxu0 0.0
        %1446 = vmatpush1.msra.mxu0 %v1365
        %1447 = vmatprep.subr.mxu0 0.0
        %1448 = vmatpush1.msra.mxu0 %v1366
        %1449 = vmatprep.subr.mxu0 0.0
        %1450 = vmatpush1.msra.mxu0 %v1367
        %1451 = vmatprep.subr.mxu0 0.0
        %1452 = vmatpush1.msra.mxu0 %v1368
        %1453 = vmatprep.subr.mxu0 0.0
        %1454 = vmatpush1.msra.mxu0 %v1369
        %1455 = vmatprep.subr.mxu0 0.0
        %1456 = vmatpush1.msra.mxu0 %v1370
        %1457 = vmatprep.subr.mxu0 0.0
        %1458 = vmatpush1.msra.mxu0 %v1371
        %1459 = vmatprep.subr.mxu0 0.0
        %1460 = vmatpush1.msra.mxu0 %v1372
        %1461 = vmatprep.subr.mxu0 0.0
        %1462 = vmatpush1.msra.mxu0 %v1373
        %1463 = vmatprep.subr.mxu0 0.0
        %1464 = vmatpush1.msra.mxu0 %v1374
        %1465 = vmatprep.subr.mxu0 0.0
        %1466 = vmatpush1.msra.mxu0 %v1375
        %1467 = vmatprep.subr.mxu0 0.0
        %1468 = vmatpush1.msra.mxu0 %v1376
        %1469 = vmatprep.subr.mxu0 0.0
        %1470 = vmatpush1.msra.mxu0 %v1377
        %1471 = vmatprep.subr.mxu0 0.0
        %1472 = vmatpush1.msra.mxu0 %v1378
        %1473 = vmatprep.subr.mxu0 0.0
        %1474 = vmatpush1.msra.mxu0 %v1379
        %1475 = vmatprep.subr.mxu0 0.0
        %1476 = vmatpush1.msra.mxu0 %v1380
        %1477 = vmatprep.subr.mxu0 0.0
        %1478 = vmatpush1.msra.mxu0 %v1381
        %1479 = vmatprep.subr.mxu0 0.0
        %1480 = vmatpush1.msra.mxu0 %v1382
        %1481 = vmatprep.subr.mxu0 0.0
        %1482 = vmatpush1.msra.mxu0 %v1383
        %1483 = vmatprep.subr.mxu0 0.0
        %1484 = vmatpush1.msra.mxu0 %v1384
        %1485 = vmatprep.subr.mxu0 0.0
        %1486 = vmatpush1.msra.mxu0 %v1385
        %1487 = vmatprep.subr.mxu0 0.0
        %1488 = vmatpush1.msra.mxu0 %v1386
        %1489 = vmatprep.subr.mxu0 0.0
        %1490 = vmatpush1.msra.mxu0 %v1387
        %1491 = vmatprep.mubr.f32.mxu0 %v1353
        %1492 = vmatmul.mubr.f32.gmra.mrb[0].mxu0 %v1352
        %v1493 = vpop.f32.mrb[0].mxu0
        %v1494 = vadd.f32 %v1425, %v1493
        %v1495 = vpop.f32.mrb[0].mxu0
        %1496 = vdwg.mxu0
        %1497 = vmatprep.subr.mxu0 0.0
        %1498 = vmatpush1.msra.mxu0 %v1388
        %1499 = vmatprep.subr.mxu0 0.0
        %1500 = vmatpush1.msra.mxu0 %v1389
        %1501 = vmatprep.subr.mxu0 0.0
        %1502 = vmatpush1.msra.mxu0 %v1390
        %1503 = vmatprep.subr.mxu0 0.0
        %1504 = vmatpush1.msra.mxu0 %v1391
        %1505 = vmatprep.subr.mxu0 0.0
        %1506 = vmatpush1.msra.mxu0 %v1392
        %1507 = vmatprep.subr.mxu0 0.0
        %1508 = vmatpush1.msra.mxu0 %v1393
        %1509 = vmatprep.subr.mxu0 0.0
        %1510 = vmatpush1.msra.mxu0 %v1394
        %1511 = vmatprep.subr.mxu0 0.0
        %1512 = vmatpush1.msra.mxu0 %v1395
        %1513 = vmatprep.subr.mxu0 0.0
        %1514 = vmatpush1.msra.mxu0 %v1396
        %1515 = vmatprep.subr.mxu0 0.0
        %1516 = vmatpush1.msra.mxu0 %v1397
        %1517 = vmatprep.subr.mxu0 0.0
        %1518 = vmatpush1.msra.mxu0 %v1398
        %1519 = vmatprep.subr.mxu0 0.0
        %1520 = vmatpush1.msra.mxu0 %v1399
        %1521 = vmatprep.subr.mxu0 0.0
        %1522 = vmatpush1.msra.mxu0 %v1400
        %1523 = vmatprep.subr.mxu0 0.0
        %1524 = vmatpush1.msra.mxu0 %v1401
        %1525 = vmatprep.subr.mxu0 0.0
        %1526 = vmatpush1.msra.mxu0 %v1402
        %1527 = vmatprep.subr.mxu0 0.0
        %1528 = vmatpush1.msra.mxu0 %v1403
        %1529 = vmatprep.subr.mxu0 0.0
        %1530 = vmatpush1.msra.mxu0 %v1404
        %1531 = vmatprep.subr.mxu0 0.0
        %1532 = vmatpush1.msra.mxu0 %v1405
        %1533 = vmatprep.subr.mxu0 0.0
        %1534 = vmatpush1.msra.mxu0 %v1406
        %1535 = vmatprep.subr.mxu0 0.0
        %1536 = vmatpush1.msra.mxu0 %v1407
        %1537 = vmatprep.subr.mxu0 0.0
        %1538 = vmatpush1.msra.mxu0 %v1408
        %1539 = vmatprep.subr.mxu0 0.0
        %1540 = vmatpush1.msra.mxu0 %v1409
        %1541 = vmatprep.subr.mxu0 0.0
        %1542 = vmatpush1.msra.mxu0 %v1410
        %1543 = vmatprep.subr.mxu0 0.0
        %1544 = vmatpush1.msra.mxu0 %v1411
        %1545 = vmatprep.subr.mxu0 0.0
        %1546 = vmatpush1.msra.mxu0 %v1412
        %1547 = vmatprep.subr.mxu0 0.0
        %1548 = vmatpush1.msra.mxu0 %v1413
        %1549 = vmatprep.subr.mxu0 0.0
        %1550 = vmatpush1.msra.mxu0 %v1414
        %1551 = vmatprep.subr.mxu0 0.0
        %1552 = vmatpush1.msra.mxu0 %v1415
        %1553 = vmatprep.subr.mxu0 0.0
        %1554 = vmatpush1.msra.mxu0 %v1416
        %1555 = vmatprep.subr.mxu0 0.0
        %1556 = vmatpush1.msra.mxu0 %v1417
        %1557 = vmatprep.subr.mxu0 0.0
        %1558 = vmatpush1.msra.mxu0 %v1418
        %1559 = vmatprep.subr.mxu0 0.0
        %1560 = vmatpush1.msra.mxu0 %v1419
        %1561 = vmatprep.mubr.f32.mxu0 %v1355
        %1562 = vmatmul.mubr.f32.gmra.mrb[0].mxu0 %v1354
        %v1563 = vpop.f32.mrb[0].mxu0
        %v1564 = vadd.f32 %v1494, %v1563
        %v1565 = vpop.f32.mrb[0].mxu0
        %1566 = vdwg.mxu0
        %v1567 = vmax.f32 %v1564, 0.0
        %v1568 = vld [vmem:[#allocation9] sm:$0xff]
        %v1569 = vld [vmem:[#allocation9 + $0x8] sm:$0xff]
        %v1570 = vld [vmem:[#allocation9 + $0x10] sm:$0xff]
        %v1571 = vld [vmem:[#allocation9 + $0x18] sm:$0xff]
        %v1572 = vld [vmem:[#allocation9 + $0x20] sm:$0xff]
        %v1573 = vld [vmem:[#allocation9 + $0x28] sm:$0xff]
        %v1574 = vld [vmem:[#allocation9 + $0x30] sm:$0xff]
        %v1575 = vld [vmem:[#allocation9 + $0x38] sm:$0xff]
        %v1576 = vld [vmem:[#allocation9 + $0x40] sm:$0xff]
        %v1577 = vld [vmem:[#allocation9 + $0x48] sm:$0xff]
        %v1578 = vld [vmem:[#allocation9 + $0x50] sm:$0xff]
        %v1579 = vld [vmem:[#allocation9 + $0x58] sm:$0xff]
        %v1580 = vld [vmem:[#allocation9 + $0x60] sm:$0xff]
        %v1581 = vld [vmem:[#allocation9 + $0x68] sm:$0xff]
        %v1582 = vld [vmem:[#allocation9 + $0x70] sm:$0xff]
        %v1583 = vld [vmem:[#allocation9 + $0x78] sm:$0xff]
        %v1584 = vld [vmem:[#allocation10] sm:$0x1]
        %v1586 = vlaneseq
        %v1587 = vshrl.u32 %v1586, 7
        %v1588 = vsub.s32 0, %v1587
        %v1589 = vrot.slane %v1584, %v1588
        %1591 = vmatprep.subr.mxu0 0.0
        %1592 = vmatpush1.msra.mxu0 %v1568
        %1593 = vmatprep.subr.mxu0 0.0
        %1594 = vmatpush1.msra.mxu0 %v1569
        %1595 = vmatprep.subr.mxu0 0.0
        %1596 = vmatpush1.msra.mxu0 %v1570
        %1597 = vmatprep.subr.mxu0 0.0
        %1598 = vmatpush1.msra.mxu0 %v1571
        %1599 = vmatprep.subr.mxu0 0.0
        %1600 = vmatpush1.msra.mxu0 %v1572
        %1601 = vmatprep.subr.mxu0 0.0
        %1602 = vmatpush1.msra.mxu0 %v1573
        %1603 = vmatprep.subr.mxu0 0.0
        %1604 = vmatpush1.msra.mxu0 %v1574
        %1605 = vmatprep.subr.mxu0 0.0
        %1606 = vmatpush1.msra.mxu0 %v1575
        %1607 = vmatprep.subr.mxu0 0.0
        %1608 = vmatpush1.msra.mxu0 %v1576
        %1609 = vmatprep.subr.mxu0 0.0
        %1610 = vmatpush1.msra.mxu0 %v1577
        %1611 = vmatprep.subr.mxu0 0.0
        %1612 = vmatpush1.msra.mxu0 %v1578
        %1613 = vmatprep.subr.mxu0 0.0
        %1614 = vmatpush1.msra.mxu0 %v1579
        %1615 = vmatprep.subr.mxu0 0.0
        %1616 = vmatpush1.msra.mxu0 %v1580
        %1617 = vmatprep.subr.mxu0 0.0
        %1618 = vmatpush1.msra.mxu0 %v1581
        %1619 = vmatprep.subr.mxu0 0.0
        %1620 = vmatpush1.msra.mxu0 %v1582
        %1621 = vmatprep.subr.mxu0 0.0
        %1622 = vmatpush1.msra.mxu0 %v1583
        %1623 = vmatprep.subr.mxu0 0.0
        %1624 = vmatpush1.msra.mxu0 0.0
        %1625 = vmatprep.subr.mxu0 0.0
        %1626 = vmatpush1.msra.mxu0 0.0
        %1627 = vmatprep.subr.mxu0 0.0
        %1628 = vmatpush1.msra.mxu0 0.0
        %1629 = vmatprep.subr.mxu0 0.0
        %1630 = vmatpush1.msra.mxu0 0.0
        %1631 = vmatprep.subr.mxu0 0.0
        %1632 = vmatpush1.msra.mxu0 0.0
        %1633 = vmatprep.subr.mxu0 0.0
        %1634 = vmatpush1.msra.mxu0 0.0
        %1635 = vmatprep.subr.mxu0 0.0
        %1636 = vmatpush1.msra.mxu0 0.0
        %1637 = vmatprep.subr.mxu0 0.0
        %1638 = vmatpush1.msra.mxu0 0.0
        %1639 = vmatprep.subr.mxu0 0.0
        %1640 = vmatpush1.msra.mxu0 0.0
        %1641 = vmatprep.subr.mxu0 0.0
        %1642 = vmatpush1.msra.mxu0 0.0
        %1643 = vmatprep.subr.mxu0 0.0
        %1644 = vmatpush1.msra.mxu0 0.0
        %1645 = vmatprep.subr.mxu0 0.0
        %1646 = vmatpush1.msra.mxu0 0.0
        %1647 = vmatprep.subr.mxu0 0.0
        %1648 = vmatpush1.msra.mxu0 0.0
        %1649 = vmatprep.subr.mxu0 0.0
        %1650 = vmatpush1.msra.mxu0 0.0
        %1651 = vmatprep.subr.mxu0 0.0
        %1652 = vmatpush1.msra.mxu0 0.0
        %1653 = vmatprep.subr.mxu0 0.0
        %1654 = vmatpush1.msra.mxu0 0.0
        %1655 = vmatprep.mubr.f32.mxu0 0.0
        %1656 = vmatmul.mubr.f32.gmra.mrb[0].mxu0 %v1567
        %v1657 = vpop.f32.mrb[0].mxu0
        %v1658 = vadd.f32 %v1589, %v1657
        %v1659 = vpop.f32.mrb[0].mxu0
        %1660 = vdwg.mxu0
        %v1661 = vmax.f32 %v1658, 0.0
        %1662 = vst [vmem:[%s358] sm:$0xff] %v1661
        %p1663 = scmp.lt.s32.totalorder %s22, 1
        %s1664 = scalar_select %p1663, %s22, 1
        %s1665 = smul.addr %s1664, 8
        %s1666 = scalar_lea.vmem %s7, %s1665
        // Predicated region
        $region73: #{model_forward.1} parent=47 // pred_check
          %p1667 = pneg %p192
        $region74: #{model_forward.1} parent=47 // pred_check_branch
          %1669 = sbr.rel (%p1667) target = $region76
        $region75: #{model_forward.1} parent=47 // pred_region
          _
        $region76: #{model_forward.1} parent=47 // pred_fallthru
          _
      $region48: #{model_forward.1} parent=5 // pred_fallthru
        _
      %p1670 = scmp.le.s32.totalorder 2, %s17
      // Predicated region
      $region77: #{model_forward.1} parent=5 // pred_check
        %p1671 = pneg %p1670
      $region78: #{model_forward.1} parent=5 // pred_check_branch
        %1673 = sbr.rel (%p1671) target = $region80
      $region79: #{model_forward.1} parent=5 // pred_region
        %s1674 = ssub.s32 %s17, 2
        // Predicated region
        $region81: #{model_forward.1} parent=79 // pred_check
          %p1675 = pneg %p198
        $region82: #{model_forward.1} parent=79 // pred_check_branch
          %1677 = sbr.rel (%p1675) target = $region84
        $region83: #{model_forward.1} parent=79 // pred_region
          %p1678 = scmp.lt.s32.totalorder %s23, 1
          %s1679 = scalar_select %p1678, %s23, 1
          %s1680 = smul.addr %s1679, 8
          %s1681 = scalar_lea.vmem %s7, %s1680
        $region84: #{model_forward.1} parent=79 // pred_fallthru
          _
      $region80: #{model_forward.1} parent=5 // pred_fallthru
        _
    $region6: #{model_forward.1} parent=1 // loop_footer
      %s21 = sadd.s32 1, %s17
    $region7: #{model_forward.1} parent=1 // loop_footer_branch
      %16 = sbr.rel target = $region3
    $region8: #{model_forward.1} parent=1 // loop_exit
      _
    %1682 = vsyncpa [#allocation3], 1
    %s1683 = scalar_lea.sflag [#allocation3], 1
    %1684 = vsyncpa %s1683, 1
    %1685 = vsyncpa [#allocation5], 1
    %1686 = vsyncpa [#allocation8], 1
    %1687 = vsyncpa [#allocation11], 1

</llo_original>
